<compile_context>
chip_gen: v6e
topology: v6e:2x2x1
jax: 0.10.0
libtpu: 0.0.40
codegen_flags: <defaults>
</compile_context>

<pallas_src>
import functools
import math

import jax
import jax.numpy as jnp
from jax import lax
from jax.experimental import pallas as pl
from jax.experimental.pallas import tpu as pltpu

T_FINAL = 1.0
GRID = 0.1
SIGMA = 0.2


def _sde_kernel(x0_ref, w_ref, b_ref, noise_ref, out_ref, *,
                dt, sigma, num_steps, n_rows, n_cols):
    """Integrate `num_steps` Milstein steps with the state carried in vregs.

    x0_ref:    (R, P) f32     initial state; R = N*C rows (sublanes), P = H*W lanes
    w_ref:     (R, R) f32     block-diagonal channel-mix weights (acc = w @ x)
    b_ref:     (R, 1) f32     per-row drift bias (wf bias tiled over batches)
    noise_ref: (S, R, P) bf16 pre-sampled N(0,1) increments, fully VMEM-resident
    out_ref:   (R, P) f32     final state
    """
    dt_f = jnp.float32(dt)
    sqrt_dt = jnp.float32(math.sqrt(dt))
    sig = jnp.float32(sigma)
    sig2 = jnp.float32(sigma * sigma)

    # Loop-invariant drift parameters: hoist loads AND lane-broadcasts out of the
    # unrolled loop so they are emitted exactly once.
    w_big = w_ref[...]                                        # (R, R)
    w_cols = [jnp.broadcast_to(w_big[:, r:r + 1], (n_rows, n_cols))
              for r in range(n_rows)]                         # R x (R, P)
    b_col = b_ref[...]                                        # (R, 1)

    def step(s, x):
        # x: (R, P) f32, register carry across steps.
        t = dt_f * s                                          # t_n = n * dt

        # drift f(t, x) = tanh(W @ x + b + t): block-diagonal channel mix as R
        # column-FMAs on the VPU (a tiny (8,8)@(8,256) MXU matmul would just add
        # push/pop latency to the serial dependency chain); tanh on the EUP.
        acc = w_cols[0] * x[0:1, :]
        for r in range(1, n_rows):
            acc = acc + w_cols[r] * x[r:r + 1, :]
        f = jnp.tanh(acc + (b_col + t))

        # diagonal diffusion g = sigma*tanh(x); g*g' = sigma^2 * tanh(x)*(1-tanh(x)^2)
        th = jnp.tanh(x)
        g = sig * th
        g_dg = sig2 * th * (1.0 - th * th)

        dW = noise_ref[s].astype(jnp.float32) * sqrt_dt       # (R, P), f32 math

        # Milstein update (reduces to Euler-Maruyama when g' == 0).
        return x + f * dt_f + g * dW + 0.5 * g_dg * (dW * dW - dt_f)

    out_ref[...] = lax.fori_loop(0, num_steps, step, x0_ref[...], unroll=True)


@jax.jit
def sde_block_forward(x_nchw, wf, bf, noise):
    """SDEBlock.forward: integrate dX = f dt + g dW from t=0 to T over the feature map.

    x_nchw: (N, C, H, W) input feature map.
    wf:     (C, C) drift 1x1-conv weight, f_c = sum_j x_j * wf[j, c] + bf[c].
    bf:     (C,)   drift bias.
    noise:  (num_steps, N, C, H, W) pre-sampled standard-normal increments in natural
            NCHW ordering (bf16 recommended; upcast to f32 inside the kernel).
    """
    N, C, H, W = x_nchw.shape
    rows, cols = N * C, H * W

    num_steps = int(round(T_FINAL / GRID))
    # Guard against GRID silently redefining dt when it does not divide T.
    assert abs(num_steps * GRID - T_FINAL) <= 1e-6, "grid must evenly divide T"
    dt = T_FINAL / num_steps
    assert noise.shape == (num_steps, N, C, H, W), noise.shape

    # Pure reshapes only (metadata; no transpose HLOs, same NCHW element order).
    x = x_nchw.reshape(rows, cols).astype(jnp.float32)
    noise_flat = noise.reshape(num_steps, rows, cols)

    # Block-diagonal channel mix over the N*C row axis:
    #   (w_big @ x)[n*C + c] = sum_j wf[j, c] * x[n*C + j];  bias tiled per batch.
    wf32 = jnp.asarray(wf, jnp.float32)
    w_big = jnp.kron(jnp.eye(N, dtype=jnp.float32), wf32.T)      # (rows, rows)
    b_col = jnp.tile(jnp.asarray(bf, jnp.float32), N).reshape(rows, 1)

    kernel = functools.partial(_sde_kernel, dt=dt, sigma=SIGMA,
                               num_steps=num_steps, n_rows=rows, n_cols=cols)

    vmem = pl.BlockSpec(memory_space=pltpu.MemorySpace.VMEM)
    out_flat = pl.pallas_call(
        kernel,
        out_shape=jax.ShapeDtypeStruct((rows, cols), jnp.float32),
        in_specs=[vmem, vmem, vmem, vmem],   # no grid: one invocation, all VMEM-resident
        out_specs=vmem,
        input_output_aliases={0: 0},         # reuse the state buffer for the output
    )(x, w_big, b_col, noise_flat)

    return out_flat.reshape(N, C, H, W)      # pure reshape back to NCHW


if __name__ == "__main__":
    key = jax.random.PRNGKey(0)
    kx, kw, kb, kn = jax.random.split(key, 4)

    N, C, H, W = 2, 4, 16, 16
    x = jax.random.normal(kx, (N, C, H, W), dtype=jnp.float32)

    # Deterministic synthetic sdefunc parameters (1x1-conv drift).
    wf = 0.1 * jax.random.normal(kw, (C, C), dtype=jnp.float32)
    bf = 0.1 * jax.random.normal(kb, (C,), dtype=jnp.float32)

    num_steps = int(round(T_FINAL / GRID))   # T=1.0, grid=0.1 -> 10 Milstein steps
    # Brownian increments in natural NCHW order; bf16 storage halves the dominant
    # noise stream (all arithmetic stays f32 in-kernel).
    noise = jax.random.normal(kn, (num_steps, N, C, H, W), dtype=jnp.bfloat16)

    out = sde_block_forward(x, wf, bf, noise)
    jax.block_until_ready(out)
    assert out.shape == (N, C, H, W) and out.dtype == jnp.float32
    print("KERNEL_OK")
</pallas_src>

<mosaic_0001>
module attributes {stable_mosaic.version = 11 : i64} {
  func.func @_sde_kernel(%arg0: memref<8x256xf32, #tpu.memory_space<vmem>>, %arg1: memref<8x8xf32, #tpu.memory_space<vmem>>, %arg2: memref<8x1xf32, #tpu.memory_space<vmem>>, %arg3: memref<10x8x256xbf16, #tpu.memory_space<vmem>>, %arg4: memref<8x256xf32, #tpu.memory_space<vmem>>) attributes {dimension_semantics = [], scalar_prefetch = 0 : i64, scratch_operands = 0 : i64, tpu.core_type = #tpu.core_type<tc>} {
    %c0 = arith.constant 0 : index
    %c0_0 = arith.constant 0 : index
    %0 = vector.load %arg1[%c0, %c0_0] : memref<8x8xf32, #tpu.memory_space<vmem>>, vector<8x8xf32>
    %1 = vector.extract_strided_slice %0 {offsets = [0, 0], sizes = [8, 1], strides = [1, 1]} : vector<8x8xf32> to vector<8x1xf32>
    %2 = vector.shape_cast %1 : vector<8x1xf32> to vector<8x1xf32>
    %3 = vector.broadcast %2 : vector<8x1xf32> to vector<8x256xf32>
    %4 = vector.extract_strided_slice %0 {offsets = [0, 1], sizes = [8, 1], strides = [1, 1]} : vector<8x8xf32> to vector<8x1xf32>
    %5 = vector.shape_cast %4 : vector<8x1xf32> to vector<8x1xf32>
    %6 = vector.broadcast %5 : vector<8x1xf32> to vector<8x256xf32>
    %7 = vector.extract_strided_slice %0 {offsets = [0, 2], sizes = [8, 1], strides = [1, 1]} : vector<8x8xf32> to vector<8x1xf32>
    %8 = vector.shape_cast %7 : vector<8x1xf32> to vector<8x1xf32>
    %9 = vector.broadcast %8 : vector<8x1xf32> to vector<8x256xf32>
    %10 = vector.extract_strided_slice %0 {offsets = [0, 3], sizes = [8, 1], strides = [1, 1]} : vector<8x8xf32> to vector<8x1xf32>
    %11 = vector.shape_cast %10 : vector<8x1xf32> to vector<8x1xf32>
    %12 = vector.broadcast %11 : vector<8x1xf32> to vector<8x256xf32>
    %13 = vector.extract_strided_slice %0 {offsets = [0, 4], sizes = [8, 1], strides = [1, 1]} : vector<8x8xf32> to vector<8x1xf32>
    %14 = vector.shape_cast %13 : vector<8x1xf32> to vector<8x1xf32>
    %15 = vector.broadcast %14 : vector<8x1xf32> to vector<8x256xf32>
    %16 = vector.extract_strided_slice %0 {offsets = [0, 5], sizes = [8, 1], strides = [1, 1]} : vector<8x8xf32> to vector<8x1xf32>
    %17 = vector.shape_cast %16 : vector<8x1xf32> to vector<8x1xf32>
    %18 = vector.broadcast %17 : vector<8x1xf32> to vector<8x256xf32>
    %19 = vector.extract_strided_slice %0 {offsets = [0, 6], sizes = [8, 1], strides = [1, 1]} : vector<8x8xf32> to vector<8x1xf32>
    %20 = vector.shape_cast %19 : vector<8x1xf32> to vector<8x1xf32>
    %21 = vector.broadcast %20 : vector<8x1xf32> to vector<8x256xf32>
    %22 = vector.extract_strided_slice %0 {offsets = [0, 7], sizes = [8, 1], strides = [1, 1]} : vector<8x8xf32> to vector<8x1xf32>
    %23 = vector.shape_cast %22 : vector<8x1xf32> to vector<8x1xf32>
    %24 = vector.broadcast %23 : vector<8x1xf32> to vector<8x256xf32>
    %c0_1 = arith.constant 0 : index
    %c0_2 = arith.constant 0 : index
    %25 = vector.load %arg2[%c0_1, %c0_2] : memref<8x1xf32, #tpu.memory_space<vmem>>, vector<8x1xf32>
    %c0_3 = arith.constant 0 : index
    %c0_4 = arith.constant 0 : index
    %26 = vector.load %arg0[%c0_3, %c0_4] : memref<8x256xf32, #tpu.memory_space<vmem>>, vector<8x256xf32>
    %cst = arith.constant 1.000000e-01 : f32
    %cst_5 = arith.constant 2.000000e-01 : f32
    %cst_6 = arith.constant 4.000000e-02 : f32
    %cst_7 = arith.constant 0.316227764 : f32
    %c0_i32 = arith.constant 0 : i32
    %27 = arith.sitofp %c0_i32 : i32 to f32
    %28 = arith.mulf %cst, %27 : f32
    %29 = vector.extract_strided_slice %26 {offsets = [0, 0], sizes = [1, 256], strides = [1, 1]} : vector<8x256xf32> to vector<1x256xf32>
    %30 = vector.broadcast %29 : vector<1x256xf32> to vector<8x256xf32>
    %31 = arith.mulf %3, %30 : vector<8x256xf32>
    %32 = vector.extract_strided_slice %26 {offsets = [1, 0], sizes = [1, 256], strides = [1, 1]} : vector<8x256xf32> to vector<1x256xf32>
    %33 = vector.broadcast %32 : vector<1x256xf32> to vector<8x256xf32>
    %34 = arith.mulf %6, %33 : vector<8x256xf32>
    %35 = arith.addf %31, %34 : vector<8x256xf32>
    %36 = vector.extract_strided_slice %26 {offsets = [2, 0], sizes = [1, 256], strides = [1, 1]} : vector<8x256xf32> to vector<1x256xf32>
    %37 = vector.broadcast %36 : vector<1x256xf32> to vector<8x256xf32>
    %38 = arith.mulf %9, %37 : vector<8x256xf32>
    %39 = arith.addf %35, %38 : vector<8x256xf32>
    %40 = vector.extract_strided_slice %26 {offsets = [3, 0], sizes = [1, 256], strides = [1, 1]} : vector<8x256xf32> to vector<1x256xf32>
    %41 = vector.broadcast %40 : vector<1x256xf32> to vector<8x256xf32>
    %42 = arith.mulf %12, %41 : vector<8x256xf32>
    %43 = arith.addf %39, %42 : vector<8x256xf32>
    %44 = vector.extract_strided_slice %26 {offsets = [4, 0], sizes = [1, 256], strides = [1, 1]} : vector<8x256xf32> to vector<1x256xf32>
    %45 = vector.broadcast %44 : vector<1x256xf32> to vector<8x256xf32>
    %46 = arith.mulf %15, %45 : vector<8x256xf32>
    %47 = arith.addf %43, %46 : vector<8x256xf32>
    %48 = vector.extract_strided_slice %26 {offsets = [5, 0], sizes = [1, 256], strides = [1, 1]} : vector<8x256xf32> to vector<1x256xf32>
    %49 = vector.broadcast %48 : vector<1x256xf32> to vector<8x256xf32>
    %50 = arith.mulf %18, %49 : vector<8x256xf32>
    %51 = arith.addf %47, %50 : vector<8x256xf32>
    %52 = vector.extract_strided_slice %26 {offsets = [6, 0], sizes = [1, 256], strides = [1, 1]} : vector<8x256xf32> to vector<1x256xf32>
    %53 = vector.broadcast %52 : vector<1x256xf32> to vector<8x256xf32>
    %54 = arith.mulf %21, %53 : vector<8x256xf32>
    %55 = arith.addf %51, %54 : vector<8x256xf32>
    %56 = vector.extract_strided_slice %26 {offsets = [7, 0], sizes = [1, 256], strides = [1, 1]} : vector<8x256xf32> to vector<1x256xf32>
    %57 = vector.broadcast %56 : vector<1x256xf32> to vector<8x256xf32>
    %58 = arith.mulf %24, %57 : vector<8x256xf32>
    %59 = arith.addf %55, %58 : vector<8x256xf32>
    %60 = vector.broadcast %28 : f32 to vector<8x1xf32>
    %61 = arith.addf %25, %60 : vector<8x1xf32>
    %62 = vector.broadcast %61 : vector<8x1xf32> to vector<8x256xf32>
    %63 = arith.addf %59, %62 : vector<8x256xf32>
    %64 = math.tanh %63 : vector<8x256xf32>
    %65 = math.tanh %26 : vector<8x256xf32>
    %66 = vector.broadcast %cst_5 : f32 to vector<8x256xf32>
    %67 = arith.mulf %66, %65 : vector<8x256xf32>
    %68 = vector.broadcast %cst_6 : f32 to vector<8x256xf32>
    %69 = arith.mulf %68, %65 : vector<8x256xf32>
    %70 = arith.mulf %65, %65 : vector<8x256xf32>
    %cst_8 = arith.constant 1.000000e+00 : f32
    %71 = vector.broadcast %cst_8 : f32 to vector<8x256xf32>
    %72 = arith.subf %71, %70 : vector<8x256xf32>
    %73 = arith.mulf %69, %72 : vector<8x256xf32>
    %74 = arith.index_cast %c0_i32 : i32 to index
    %c0_9 = arith.constant 0 : index
    %c0_10 = arith.constant 0 : index
    %75 = vector.load %arg3[%74, %c0_9, %c0_10] : memref<10x8x256xbf16, #tpu.memory_space<vmem>>, vector<1x8x256xbf16>
    %76 = vector.shape_cast %75 : vector<1x8x256xbf16> to vector<8x256xbf16>
    %77 = arith.extf %76 : vector<8x256xbf16> to vector<8x256xf32>
    %78 = vector.broadcast %cst_7 : f32 to vector<8x256xf32>
    %79 = arith.mulf %77, %78 : vector<8x256xf32>
    %80 = vector.broadcast %cst : f32 to vector<8x256xf32>
    %81 = arith.mulf %64, %80 : vector<8x256xf32>
    %82 = arith.addf %26, %81 : vector<8x256xf32>
    %83 = arith.mulf %67, %79 : vector<8x256xf32>
    %84 = arith.addf %82, %83 : vector<8x256xf32>
    %cst_11 = arith.constant 5.000000e-01 : f32
    %85 = vector.broadcast %cst_11 : f32 to vector<8x256xf32>
    %86 = arith.mulf %85, %73 : vector<8x256xf32>
    %87 = arith.mulf %79, %79 : vector<8x256xf32>
    %88 = vector.broadcast %cst : f32 to vector<8x256xf32>
    %89 = arith.subf %87, %88 : vector<8x256xf32>
    %90 = arith.mulf %86, %89 : vector<8x256xf32>
    %91 = arith.addf %84, %90 : vector<8x256xf32>
    %c1_i32 = arith.constant 1 : i32
    %92 = arith.sitofp %c1_i32 : i32 to f32
    %93 = arith.mulf %cst, %92 : f32
    %94 = vector.extract_strided_slice %91 {offsets = [0, 0], sizes = [1, 256], strides = [1, 1]} : vector<8x256xf32> to vector<1x256xf32>
    %95 = vector.broadcast %94 : vector<1x256xf32> to vector<8x256xf32>
    %96 = arith.mulf %3, %95 : vector<8x256xf32>
    %97 = vector.extract_strided_slice %91 {offsets = [1, 0], sizes = [1, 256], strides = [1, 1]} : vector<8x256xf32> to vector<1x256xf32>
    %98 = vector.broadcast %97 : vector<1x256xf32> to vector<8x256xf32>
    %99 = arith.mulf %6, %98 : vector<8x256xf32>
    %100 = arith.addf %96, %99 : vector<8x256xf32>
    %101 = vector.extract_strided_slice %91 {offsets = [2, 0], sizes = [1, 256], strides = [1, 1]} : vector<8x256xf32> to vector<1x256xf32>
    %102 = vector.broadcast %101 : vector<1x256xf32> to vector<8x256xf32>
    %103 = arith.mulf %9, %102 : vector<8x256xf32>
    %104 = arith.addf %100, %103 : vector<8x256xf32>
    %105 = vector.extract_strided_slice %91 {offsets = [3, 0], sizes = [1, 256], strides = [1, 1]} : vector<8x256xf32> to vector<1x256xf32>
    %106 = vector.broadcast %105 : vector<1x256xf32> to vector<8x256xf32>
    %107 = arith.mulf %12, %106 : vector<8x256xf32>
    %108 = arith.addf %104, %107 : vector<8x256xf32>
    %109 = vector.extract_strided_slice %91 {offsets = [4, 0], sizes = [1, 256], strides = [1, 1]} : vector<8x256xf32> to vector<1x256xf32>
    %110 = vector.broadcast %109 : vector<1x256xf32> to vector<8x256xf32>
    %111 = arith.mulf %15, %110 : vector<8x256xf32>
    %112 = arith.addf %108, %111 : vector<8x256xf32>
    %113 = vector.extract_strided_slice %91 {offsets = [5, 0], sizes = [1, 256], strides = [1, 1]} : vector<8x256xf32> to vector<1x256xf32>
    %114 = vector.broadcast %113 : vector<1x256xf32> to vector<8x256xf32>
    %115 = arith.mulf %18, %114 : vector<8x256xf32>
    %116 = arith.addf %112, %115 : vector<8x256xf32>
    %117 = vector.extract_strided_slice %91 {offsets = [6, 0], sizes = [1, 256], strides = [1, 1]} : vector<8x256xf32> to vector<1x256xf32>
    %118 = vector.broadcast %117 : vector<1x256xf32> to vector<8x256xf32>
    %119 = arith.mulf %21, %118 : vector<8x256xf32>
    %120 = arith.addf %116, %119 : vector<8x256xf32>
    %121 = vector.extract_strided_slice %91 {offsets = [7, 0], sizes = [1, 256], strides = [1, 1]} : vector<8x256xf32> to vector<1x256xf32>
    %122 = vector.broadcast %121 : vector<1x256xf32> to vector<8x256xf32>
    %123 = arith.mulf %24, %122 : vector<8x256xf32>
    %124 = arith.addf %120, %123 : vector<8x256xf32>
    %125 = vector.broadcast %93 : f32 to vector<8x1xf32>
    %126 = arith.addf %25, %125 : vector<8x1xf32>
    %127 = vector.broadcast %126 : vector<8x1xf32> to vector<8x256xf32>
    %128 = arith.addf %124, %127 : vector<8x256xf32>
    %129 = math.tanh %128 : vector<8x256xf32>
    %130 = math.tanh %91 : vector<8x256xf32>
    %131 = vector.broadcast %cst_5 : f32 to vector<8x256xf32>
    %132 = arith.mulf %131, %130 : vector<8x256xf32>
    %133 = vector.broadcast %cst_6 : f32 to vector<8x256xf32>
    %134 = arith.mulf %133, %130 : vector<8x256xf32>
    %135 = arith.mulf %130, %130 : vector<8x256xf32>
    %cst_12 = arith.constant 1.000000e+00 : f32
    %136 = vector.broadcast %cst_12 : f32 to vector<8x256xf32>
    %137 = arith.subf %136, %135 : vector<8x256xf32>
    %138 = arith.mulf %134, %137 : vector<8x256xf32>
    %139 = arith.index_cast %c1_i32 : i32 to index
    %c0_13 = arith.constant 0 : index
    %c0_14 = arith.constant 0 : index
    %140 = vector.load %arg3[%139, %c0_13, %c0_14] : memref<10x8x256xbf16, #tpu.memory_space<vmem>>, vector<1x8x256xbf16>
    %141 = vector.shape_cast %140 : vector<1x8x256xbf16> to vector<8x256xbf16>
    %142 = arith.extf %141 : vector<8x256xbf16> to vector<8x256xf32>
    %143 = vector.broadcast %cst_7 : f32 to vector<8x256xf32>
    %144 = arith.mulf %142, %143 : vector<8x256xf32>
    %145 = vector.broadcast %cst : f32 to vector<8x256xf32>
    %146 = arith.mulf %129, %145 : vector<8x256xf32>
    %147 = arith.addf %91, %146 : vector<8x256xf32>
    %148 = arith.mulf %132, %144 : vector<8x256xf32>
    %149 = arith.addf %147, %148 : vector<8x256xf32>
    %cst_15 = arith.constant 5.000000e-01 : f32
    %150 = vector.broadcast %cst_15 : f32 to vector<8x256xf32>
    %151 = arith.mulf %150, %138 : vector<8x256xf32>
    %152 = arith.mulf %144, %144 : vector<8x256xf32>
    %153 = vector.broadcast %cst : f32 to vector<8x256xf32>
    %154 = arith.subf %152, %153 : vector<8x256xf32>
    %155 = arith.mulf %151, %154 : vector<8x256xf32>
    %156 = arith.addf %149, %155 : vector<8x256xf32>
    %c2_i32 = arith.constant 2 : i32
    %157 = arith.sitofp %c2_i32 : i32 to f32
    %158 = arith.mulf %cst, %157 : f32
    %159 = vector.extract_strided_slice %156 {offsets = [0, 0], sizes = [1, 256], strides = [1, 1]} : vector<8x256xf32> to vector<1x256xf32>
    %160 = vector.broadcast %159 : vector<1x256xf32> to vector<8x256xf32>
    %161 = arith.mulf %3, %160 : vector<8x256xf32>
    %162 = vector.extract_strided_slice %156 {offsets = [1, 0], sizes = [1, 256], strides = [1, 1]} : vector<8x256xf32> to vector<1x256xf32>
    %163 = vector.broadcast %162 : vector<1x256xf32> to vector<8x256xf32>
    %164 = arith.mulf %6, %163 : vector<8x256xf32>
    %165 = arith.addf %161, %164 : vector<8x256xf32>
    %166 = vector.extract_strided_slice %156 {offsets = [2, 0], sizes = [1, 256], strides = [1, 1]} : vector<8x256xf32> to vector<1x256xf32>
    %167 = vector.broadcast %166 : vector<1x256xf32> to vector<8x256xf32>
    %168 = arith.mulf %9, %167 : vector<8x256xf32>
    %169 = arith.addf %165, %168 : vector<8x256xf32>
    %170 = vector.extract_strided_slice %156 {offsets = [3, 0], sizes = [1, 256], strides = [1, 1]} : vector<8x256xf32> to vector<1x256xf32>
    %171 = vector.broadcast %170 : vector<1x256xf32> to vector<8x256xf32>
    %172 = arith.mulf %12, %171 : vector<8x256xf32>
    %173 = arith.addf %169, %172 : vector<8x256xf32>
    %174 = vector.extract_strided_slice %156 {offsets = [4, 0], sizes = [1, 256], strides = [1, 1]} : vector<8x256xf32> to vector<1x256xf32>
    %175 = vector.broadcast %174 : vector<1x256xf32> to vector<8x256xf32>
    %176 = arith.mulf %15, %175 : vector<8x256xf32>
    %177 = arith.addf %173, %176 : vector<8x256xf32>
    %178 = vector.extract_strided_slice %156 {offsets = [5, 0], sizes = [1, 256], strides = [1, 1]} : vector<8x256xf32> to vector<1x256xf32>
    %179 = vector.broadcast %178 : vector<1x256xf32> to vector<8x256xf32>
    %180 = arith.mulf %18, %179 : vector<8x256xf32>
    %181 = arith.addf %177, %180 : vector<8x256xf32>
    %182 = vector.extract_strided_slice %156 {offsets = [6, 0], sizes = [1, 256], strides = [1, 1]} : vector<8x256xf32> to vector<1x256xf32>
    %183 = vector.broadcast %182 : vector<1x256xf32> to vector<8x256xf32>
    %184 = arith.mulf %21, %183 : vector<8x256xf32>
    %185 = arith.addf %181, %184 : vector<8x256xf32>
    %186 = vector.extract_strided_slice %156 {offsets = [7, 0], sizes = [1, 256], strides = [1, 1]} : vector<8x256xf32> to vector<1x256xf32>
    %187 = vector.broadcast %186 : vector<1x256xf32> to vector<8x256xf32>
    %188 = arith.mulf %24, %187 : vector<8x256xf32>
    %189 = arith.addf %185, %188 : vector<8x256xf32>
    %190 = vector.broadcast %158 : f32 to vector<8x1xf32>
    %191 = arith.addf %25, %190 : vector<8x1xf32>
    %192 = vector.broadcast %191 : vector<8x1xf32> to vector<8x256xf32>
    %193 = arith.addf %189, %192 : vector<8x256xf32>
    %194 = math.tanh %193 : vector<8x256xf32>
    %195 = math.tanh %156 : vector<8x256xf32>
    %196 = vector.broadcast %cst_5 : f32 to vector<8x256xf32>
    %197 = arith.mulf %196, %195 : vector<8x256xf32>
    %198 = vector.broadcast %cst_6 : f32 to vector<8x256xf32>
    %199 = arith.mulf %198, %195 : vector<8x256xf32>
    %200 = arith.mulf %195, %195 : vector<8x256xf32>
    %cst_16 = arith.constant 1.000000e+00 : f32
    %201 = vector.broadcast %cst_16 : f32 to vector<8x256xf32>
    %202 = arith.subf %201, %200 : vector<8x256xf32>
    %203 = arith.mulf %199, %202 : vector<8x256xf32>
    %204 = arith.index_cast %c2_i32 : i32 to index
    %c0_17 = arith.constant 0 : index
    %c0_18 = arith.constant 0 : index
    %205 = vector.load %arg3[%204, %c0_17, %c0_18] : memref<10x8x256xbf16, #tpu.memory_space<vmem>>, vector<1x8x256xbf16>
    %206 = vector.shape_cast %205 : vector<1x8x256xbf16> to vector<8x256xbf16>
    %207 = arith.extf %206 : vector<8x256xbf16> to vector<8x256xf32>
    %208 = vector.broadcast %cst_7 : f32 to vector<8x256xf32>
    %209 = arith.mulf %207, %208 : vector<8x256xf32>
    %210 = vector.broadcast %cst : f32 to vector<8x256xf32>
    %211 = arith.mulf %194, %210 : vector<8x256xf32>
    %212 = arith.addf %156, %211 : vector<8x256xf32>
    %213 = arith.mulf %197, %209 : vector<8x256xf32>
    %214 = arith.addf %212, %213 : vector<8x256xf32>
    %cst_19 = arith.constant 5.000000e-01 : f32
    %215 = vector.broadcast %cst_19 : f32 to vector<8x256xf32>
    %216 = arith.mulf %215, %203 : vector<8x256xf32>
    %217 = arith.mulf %209, %209 : vector<8x256xf32>
    %218 = vector.broadcast %cst : f32 to vector<8x256xf32>
    %219 = arith.subf %217, %218 : vector<8x256xf32>
    %220 = arith.mulf %216, %219 : vector<8x256xf32>
    %221 = arith.addf %214, %220 : vector<8x256xf32>
    %c3_i32 = arith.constant 3 : i32
    %222 = arith.sitofp %c3_i32 : i32 to f32
    %223 = arith.mulf %cst, %222 : f32
    %224 = vector.extract_strided_slice %221 {offsets = [0, 0], sizes = [1, 256], strides = [1, 1]} : vector<8x256xf32> to vector<1x256xf32>
    %225 = vector.broadcast %224 : vector<1x256xf32> to vector<8x256xf32>
    %226 = arith.mulf %3, %225 : vector<8x256xf32>
    %227 = vector.extract_strided_slice %221 {offsets = [1, 0], sizes = [1, 256], strides = [1, 1]} : vector<8x256xf32> to vector<1x256xf32>
    %228 = vector.broadcast %227 : vector<1x256xf32> to vector<8x256xf32>
    %229 = arith.mulf %6, %228 : vector<8x256xf32>
    %230 = arith.addf %226, %229 : vector<8x256xf32>
    %231 = vector.extract_strided_slice %221 {offsets = [2, 0], sizes = [1, 256], strides = [1, 1]} : vector<8x256xf32> to vector<1x256xf32>
    %232 = vector.broadcast %231 : vector<1x256xf32> to vector<8x256xf32>
    %233 = arith.mulf %9, %232 : vector<8x256xf32>
    %234 = arith.addf %230, %233 : vector<8x256xf32>
    %235 = vector.extract_strided_slice %221 {offsets = [3, 0], sizes = [1, 256], strides = [1, 1]} : vector<8x256xf32> to vector<1x256xf32>
    %236 = vector.broadcast %235 : vector<1x256xf32> to vector<8x256xf32>
    %237 = arith.mulf %12, %236 : vector<8x256xf32>
    %238 = arith.addf %234, %237 : vector<8x256xf32>
    %239 = vector.extract_strided_slice %221 {offsets = [4, 0], sizes = [1, 256], strides = [1, 1]} : vector<8x256xf32> to vector<1x256xf32>
    %240 = vector.broadcast %239 : vector<1x256xf32> to vector<8x256xf32>
    %241 = arith.mulf %15, %240 : vector<8x256xf32>
    %242 = arith.addf %238, %241 : vector<8x256xf32>
    %243 = vector.extract_strided_slice %221 {offsets = [5, 0], sizes = [1, 256], strides = [1, 1]} : vector<8x256xf32> to vector<1x256xf32>
    %244 = vector.broadcast %243 : vector<1x256xf32> to vector<8x256xf32>
    %245 = arith.mulf %18, %244 : vector<8x256xf32>
    %246 = arith.addf %242, %245 : vector<8x256xf32>
    %247 = vector.extract_strided_slice %221 {offsets = [6, 0], sizes = [1, 256], strides = [1, 1]} : vector<8x256xf32> to vector<1x256xf32>
    %248 = vector.broadcast %247 : vector<1x256xf32> to vector<8x256xf32>
    %249 = arith.mulf %21, %248 : vector<8x256xf32>
    %250 = arith.addf %246, %249 : vector<8x256xf32>
    %251 = vector.extract_strided_slice %221 {offsets = [7, 0], sizes = [1, 256], strides = [1, 1]} : vector<8x256xf32> to vector<1x256xf32>
    %252 = vector.broadcast %251 : vector<1x256xf32> to vector<8x256xf32>
    %253 = arith.mulf %24, %252 : vector<8x256xf32>
    %254 = arith.addf %250, %253 : vector<8x256xf32>
    %255 = vector.broadcast %223 : f32 to vector<8x1xf32>
    %256 = arith.addf %25, %255 : vector<8x1xf32>
    %257 = vector.broadcast %256 : vector<8x1xf32> to vector<8x256xf32>
    %258 = arith.addf %254, %257 : vector<8x256xf32>
    %259 = math.tanh %258 : vector<8x256xf32>
    %260 = math.tanh %221 : vector<8x256xf32>
    %261 = vector.broadcast %cst_5 : f32 to vector<8x256xf32>
    %262 = arith.mulf %261, %260 : vector<8x256xf32>
    %263 = vector.broadcast %cst_6 : f32 to vector<8x256xf32>
    %264 = arith.mulf %263, %260 : vector<8x256xf32>
    %265 = arith.mulf %260, %260 : vector<8x256xf32>
    %cst_20 = arith.constant 1.000000e+00 : f32
    %266 = vector.broadcast %cst_20 : f32 to vector<8x256xf32>
    %267 = arith.subf %266, %265 : vector<8x256xf32>
    %268 = arith.mulf %264, %267 : vector<8x256xf32>
    %269 = arith.index_cast %c3_i32 : i32 to index
    %c0_21 = arith.constant 0 : index
    %c0_22 = arith.constant 0 : index
    %270 = vector.load %arg3[%269, %c0_21, %c0_22] : memref<10x8x256xbf16, #tpu.memory_space<vmem>>, vector<1x8x256xbf16>
    %271 = vector.shape_cast %270 : vector<1x8x256xbf16> to vector<8x256xbf16>
    %272 = arith.extf %271 : vector<8x256xbf16> to vector<8x256xf32>
    %273 = vector.broadcast %cst_7 : f32 to vector<8x256xf32>
    %274 = arith.mulf %272, %273 : vector<8x256xf32>
    %275 = vector.broadcast %cst : f32 to vector<8x256xf32>
    %276 = arith.mulf %259, %275 : vector<8x256xf32>
    %277 = arith.addf %221, %276 : vector<8x256xf32>
    %278 = arith.mulf %262, %274 : vector<8x256xf32>
    %279 = arith.addf %277, %278 : vector<8x256xf32>
    %cst_23 = arith.constant 5.000000e-01 : f32
    %280 = vector.broadcast %cst_23 : f32 to vector<8x256xf32>
    %281 = arith.mulf %280, %268 : vector<8x256xf32>
    %282 = arith.mulf %274, %274 : vector<8x256xf32>
    %283 = vector.broadcast %cst : f32 to vector<8x256xf32>
    %284 = arith.subf %282, %283 : vector<8x256xf32>
    %285 = arith.mulf %281, %284 : vector<8x256xf32>
    %286 = arith.addf %279, %285 : vector<8x256xf32>
    %c4_i32 = arith.constant 4 : i32
    %287 = arith.sitofp %c4_i32 : i32 to f32
    %288 = arith.mulf %cst, %287 : f32
    %289 = vector.extract_strided_slice %286 {offsets = [0, 0], sizes = [1, 256], strides = [1, 1]} : vector<8x256xf32> to vector<1x256xf32>
    %290 = vector.broadcast %289 : vector<1x256xf32> to vector<8x256xf32>
    %291 = arith.mulf %3, %290 : vector<8x256xf32>
    %292 = vector.extract_strided_slice %286 {offsets = [1, 0], sizes = [1, 256], strides = [1, 1]} : vector<8x256xf32> to vector<1x256xf32>
    %293 = vector.broadcast %292 : vector<1x256xf32> to vector<8x256xf32>
    %294 = arith.mulf %6, %293 : vector<8x256xf32>
    %295 = arith.addf %291, %294 : vector<8x256xf32>
    %296 = vector.extract_strided_slice %286 {offsets = [2, 0], sizes = [1, 256], strides = [1, 1]} : vector<8x256xf32> to vector<1x256xf32>
    %297 = vector.broadcast %296 : vector<1x256xf32> to vector<8x256xf32>
    %298 = arith.mulf %9, %297 : vector<8x256xf32>
    %299 = arith.addf %295, %298 : vector<8x256xf32>
    %300 = vector.extract_strided_slice %286 {offsets = [3, 0], sizes = [1, 256], strides = [1, 1]} : vector<8x256xf32> to vector<1x256xf32>
    %301 = vector.broadcast %300 : vector<1x256xf32> to vector<8x256xf32>
    %302 = arith.mulf %12, %301 : vector<8x256xf32>
    %303 = arith.addf %299, %302 : vector<8x256xf32>
    %304 = vector.extract_strided_slice %286 {offsets = [4, 0], sizes = [1, 256], strides = [1, 1]} : vector<8x256xf32> to vector<1x256xf32>
    %305 = vector.broadcast %304 : vector<1x256xf32> to vector<8x256xf32>
    %306 = arith.mulf %15, %305 : vector<8x256xf32>
    %307 = arith.addf %303, %306 : vector<8x256xf32>
    %308 = vector.extract_strided_slice %286 {offsets = [5, 0], sizes = [1, 256], strides = [1, 1]} : vector<8x256xf32> to vector<1x256xf32>
    %309 = vector.broadcast %308 : vector<1x256xf32> to vector<8x256xf32>
    %310 = arith.mulf %18, %309 : vector<8x256xf32>
    %311 = arith.addf %307, %310 : vector<8x256xf32>
    %312 = vector.extract_strided_slice %286 {offsets = [6, 0], sizes = [1, 256], strides = [1, 1]} : vector<8x256xf32> to vector<1x256xf32>
    %313 = vector.broadcast %312 : vector<1x256xf32> to vector<8x256xf32>
    %314 = arith.mulf %21, %313 : vector<8x256xf32>
    %315 = arith.addf %311, %314 : vector<8x256xf32>
    %316 = vector.extract_strided_slice %286 {offsets = [7, 0], sizes = [1, 256], strides = [1, 1]} : vector<8x256xf32> to vector<1x256xf32>
    %317 = vector.broadcast %316 : vector<1x256xf32> to vector<8x256xf32>
    %318 = arith.mulf %24, %317 : vector<8x256xf32>
    %319 = arith.addf %315, %318 : vector<8x256xf32>
    %320 = vector.broadcast %288 : f32 to vector<8x1xf32>
    %321 = arith.addf %25, %320 : vector<8x1xf32>
    %322 = vector.broadcast %321 : vector<8x1xf32> to vector<8x256xf32>
    %323 = arith.addf %319, %322 : vector<8x256xf32>
    %324 = math.tanh %323 : vector<8x256xf32>
    %325 = math.tanh %286 : vector<8x256xf32>
    %326 = vector.broadcast %cst_5 : f32 to vector<8x256xf32>
    %327 = arith.mulf %326, %325 : vector<8x256xf32>
    %328 = vector.broadcast %cst_6 : f32 to vector<8x256xf32>
    %329 = arith.mulf %328, %325 : vector<8x256xf32>
    %330 = arith.mulf %325, %325 : vector<8x256xf32>
    %cst_24 = arith.constant 1.000000e+00 : f32
    %331 = vector.broadcast %cst_24 : f32 to vector<8x256xf32>
    %332 = arith.subf %331, %330 : vector<8x256xf32>
    %333 = arith.mulf %329, %332 : vector<8x256xf32>
    %334 = arith.index_cast %c4_i32 : i32 to index
    %c0_25 = arith.constant 0 : index
    %c0_26 = arith.constant 0 : index
    %335 = vector.load %arg3[%334, %c0_25, %c0_26] : memref<10x8x256xbf16, #tpu.memory_space<vmem>>, vector<1x8x256xbf16>
    %336 = vector.shape_cast %335 : vector<1x8x256xbf16> to vector<8x256xbf16>
    %337 = arith.extf %336 : vector<8x256xbf16> to vector<8x256xf32>
    %338 = vector.broadcast %cst_7 : f32 to vector<8x256xf32>
    %339 = arith.mulf %337, %338 : vector<8x256xf32>
    %340 = vector.broadcast %cst : f32 to vector<8x256xf32>
    %341 = arith.mulf %324, %340 : vector<8x256xf32>
    %342 = arith.addf %286, %341 : vector<8x256xf32>
    %343 = arith.mulf %327, %339 : vector<8x256xf32>
    %344 = arith.addf %342, %343 : vector<8x256xf32>
    %cst_27 = arith.constant 5.000000e-01 : f32
    %345 = vector.broadcast %cst_27 : f32 to vector<8x256xf32>
    %346 = arith.mulf %345, %333 : vector<8x256xf32>
    %347 = arith.mulf %339, %339 : vector<8x256xf32>
    %348 = vector.broadcast %cst : f32 to vector<8x256xf32>
    %349 = arith.subf %347, %348 : vector<8x256xf32>
    %350 = arith.mulf %346, %349 : vector<8x256xf32>
    %351 = arith.addf %344, %350 : vector<8x256xf32>
    %c5_i32 = arith.constant 5 : i32
    %352 = arith.sitofp %c5_i32 : i32 to f32
    %353 = arith.mulf %cst, %352 : f32
    %354 = vector.extract_strided_slice %351 {offsets = [0, 0], sizes = [1, 256], strides = [1, 1]} : vector<8x256xf32> to vector<1x256xf32>
    %355 = vector.broadcast %354 : vector<1x256xf32> to vector<8x256xf32>
    %356 = arith.mulf %3, %355 : vector<8x256xf32>
    %357 = vector.extract_strided_slice %351 {offsets = [1, 0], sizes = [1, 256], strides = [1, 1]} : vector<8x256xf32> to vector<1x256xf32>
    %358 = vector.broadcast %357 : vector<1x256xf32> to vector<8x256xf32>
    %359 = arith.mulf %6, %358 : vector<8x256xf32>
    %360 = arith.addf %356, %359 : vector<8x256xf32>
    %361 = vector.extract_strided_slice %351 {offsets = [2, 0], sizes = [1, 256], strides = [1, 1]} : vector<8x256xf32> to vector<1x256xf32>
    %362 = vector.broadcast %361 : vector<1x256xf32> to vector<8x256xf32>
    %363 = arith.mulf %9, %362 : vector<8x256xf32>
    %364 = arith.addf %360, %363 : vector<8x256xf32>
    %365 = vector.extract_strided_slice %351 {offsets = [3, 0], sizes = [1, 256], strides = [1, 1]} : vector<8x256xf32> to vector<1x256xf32>
    %366 = vector.broadcast %365 : vector<1x256xf32> to vector<8x256xf32>
    %367 = arith.mulf %12, %366 : vector<8x256xf32>
    %368 = arith.addf %364, %367 : vector<8x256xf32>
    %369 = vector.extract_strided_slice %351 {offsets = [4, 0], sizes = [1, 256], strides = [1, 1]} : vector<8x256xf32> to vector<1x256xf32>
    %370 = vector.broadcast %369 : vector<1x256xf32> to vector<8x256xf32>
    %371 = arith.mulf %15, %370 : vector<8x256xf32>
    %372 = arith.addf %368, %371 : vector<8x256xf32>
    %373 = vector.extract_strided_slice %351 {offsets = [5, 0], sizes = [1, 256], strides = [1, 1]} : vector<8x256xf32> to vector<1x256xf32>
    %374 = vector.broadcast %373 : vector<1x256xf32> to vector<8x256xf32>
    %375 = arith.mulf %18, %374 : vector<8x256xf32>
    %376 = arith.addf %372, %375 : vector<8x256xf32>
    %377 = vector.extract_strided_slice %351 {offsets = [6, 0], sizes = [1, 256], strides = [1, 1]} : vector<8x256xf32> to vector<1x256xf32>
    %378 = vector.broadcast %377 : vector<1x256xf32> to vector<8x256xf32>
    %379 = arith.mulf %21, %378 : vector<8x256xf32>
    %380 = arith.addf %376, %379 : vector<8x256xf32>
    %381 = vector.extract_strided_slice %351 {offsets = [7, 0], sizes = [1, 256], strides = [1, 1]} : vector<8x256xf32> to vector<1x256xf32>
    %382 = vector.broadcast %381 : vector<1x256xf32> to vector<8x256xf32>
    %383 = arith.mulf %24, %382 : vector<8x256xf32>
    %384 = arith.addf %380, %383 : vector<8x256xf32>
    %385 = vector.broadcast %353 : f32 to vector<8x1xf32>
    %386 = arith.addf %25, %385 : vector<8x1xf32>
    %387 = vector.broadcast %386 : vector<8x1xf32> to vector<8x256xf32>
    %388 = arith.addf %384, %387 : vector<8x256xf32>
    %389 = math.tanh %388 : vector<8x256xf32>
    %390 = math.tanh %351 : vector<8x256xf32>
    %391 = vector.broadcast %cst_5 : f32 to vector<8x256xf32>
    %392 = arith.mulf %391, %390 : vector<8x256xf32>
    %393 = vector.broadcast %cst_6 : f32 to vector<8x256xf32>
    %394 = arith.mulf %393, %390 : vector<8x256xf32>
    %395 = arith.mulf %390, %390 : vector<8x256xf32>
    %cst_28 = arith.constant 1.000000e+00 : f32
    %396 = vector.broadcast %cst_28 : f32 to vector<8x256xf32>
    %397 = arith.subf %396, %395 : vector<8x256xf32>
    %398 = arith.mulf %394, %397 : vector<8x256xf32>
    %399 = arith.index_cast %c5_i32 : i32 to index
    %c0_29 = arith.constant 0 : index
    %c0_30 = arith.constant 0 : index
    %400 = vector.load %arg3[%399, %c0_29, %c0_30] : memref<10x8x256xbf16, #tpu.memory_space<vmem>>, vector<1x8x256xbf16>
    %401 = vector.shape_cast %400 : vector<1x8x256xbf16> to vector<8x256xbf16>
    %402 = arith.extf %401 : vector<8x256xbf16> to vector<8x256xf32>
    %403 = vector.broadcast %cst_7 : f32 to vector<8x256xf32>
    %404 = arith.mulf %402, %403 : vector<8x256xf32>
    %405 = vector.broadcast %cst : f32 to vector<8x256xf32>
    %406 = arith.mulf %389, %405 : vector<8x256xf32>
    %407 = arith.addf %351, %406 : vector<8x256xf32>
    %408 = arith.mulf %392, %404 : vector<8x256xf32>
    %409 = arith.addf %407, %408 : vector<8x256xf32>
    %cst_31 = arith.constant 5.000000e-01 : f32
    %410 = vector.broadcast %cst_31 : f32 to vector<8x256xf32>
    %411 = arith.mulf %410, %398 : vector<8x256xf32>
    %412 = arith.mulf %404, %404 : vector<8x256xf32>
    %413 = vector.broadcast %cst : f32 to vector<8x256xf32>
    %414 = arith.subf %412, %413 : vector<8x256xf32>
    %415 = arith.mulf %411, %414 : vector<8x256xf32>
    %416 = arith.addf %409, %415 : vector<8x256xf32>
    %c6_i32 = arith.constant 6 : i32
    %417 = arith.sitofp %c6_i32 : i32 to f32
    %418 = arith.mulf %cst, %417 : f32
    %419 = vector.extract_strided_slice %416 {offsets = [0, 0], sizes = [1, 256], strides = [1, 1]} : vector<8x256xf32> to vector<1x256xf32>
    %420 = vector.broadcast %419 : vector<1x256xf32> to vector<8x256xf32>
    %421 = arith.mulf %3, %420 : vector<8x256xf32>
    %422 = vector.extract_strided_slice %416 {offsets = [1, 0], sizes = [1, 256], strides = [1, 1]} : vector<8x256xf32> to vector<1x256xf32>
    %423 = vector.broadcast %422 : vector<1x256xf32> to vector<8x256xf32>
    %424 = arith.mulf %6, %423 : vector<8x256xf32>
    %425 = arith.addf %421, %424 : vector<8x256xf32>
    %426 = vector.extract_strided_slice %416 {offsets = [2, 0], sizes = [1, 256], strides = [1, 1]} : vector<8x256xf32> to vector<1x256xf32>
    %427 = vector.broadcast %426 : vector<1x256xf32> to vector<8x256xf32>
    %428 = arith.mulf %9, %427 : vector<8x256xf32>
    %429 = arith.addf %425, %428 : vector<8x256xf32>
    %430 = vector.extract_strided_slice %416 {offsets = [3, 0], sizes = [1, 256], strides = [1, 1]} : vector<8x256xf32> to vector<1x256xf32>
    %431 = vector.broadcast %430 : vector<1x256xf32> to vector<8x256xf32>
    %432 = arith.mulf %12, %431 : vector<8x256xf32>
    %433 = arith.addf %429, %432 : vector<8x256xf32>
    %434 = vector.extract_strided_slice %416 {offsets = [4, 0], sizes = [1, 256], strides = [1, 1]} : vector<8x256xf32> to vector<1x256xf32>
    %435 = vector.broadcast %434 : vector<1x256xf32> to vector<8x256xf32>
    %436 = arith.mulf %15, %435 : vector<8x256xf32>
    %437 = arith.addf %433, %436 : vector<8x256xf32>
    %438 = vector.extract_strided_slice %416 {offsets = [5, 0], sizes = [1, 256], strides = [1, 1]} : vector<8x256xf32> to vector<1x256xf32>
    %439 = vector.broadcast %438 : vector<1x256xf32> to vector<8x256xf32>
    %440 = arith.mulf %18, %439 : vector<8x256xf32>
    %441 = arith.addf %437, %440 : vector<8x256xf32>
    %442 = vector.extract_strided_slice %416 {offsets = [6, 0], sizes = [1, 256], strides = [1, 1]} : vector<8x256xf32> to vector<1x256xf32>
    %443 = vector.broadcast %442 : vector<1x256xf32> to vector<8x256xf32>
    %444 = arith.mulf %21, %443 : vector<8x256xf32>
    %445 = arith.addf %441, %444 : vector<8x256xf32>
    %446 = vector.extract_strided_slice %416 {offsets = [7, 0], sizes = [1, 256], strides = [1, 1]} : vector<8x256xf32> to vector<1x256xf32>
    %447 = vector.broadcast %446 : vector<1x256xf32> to vector<8x256xf32>
    %448 = arith.mulf %24, %447 : vector<8x256xf32>
    %449 = arith.addf %445, %448 : vector<8x256xf32>
    %450 = vector.broadcast %418 : f32 to vector<8x1xf32>
    %451 = arith.addf %25, %450 : vector<8x1xf32>
    %452 = vector.broadcast %451 : vector<8x1xf32> to vector<8x256xf32>
    %453 = arith.addf %449, %452 : vector<8x256xf32>
    %454 = math.tanh %453 : vector<8x256xf32>
    %455 = math.tanh %416 : vector<8x256xf32>
    %456 = vector.broadcast %cst_5 : f32 to vector<8x256xf32>
    %457 = arith.mulf %456, %455 : vector<8x256xf32>
    %458 = vector.broadcast %cst_6 : f32 to vector<8x256xf32>
    %459 = arith.mulf %458, %455 : vector<8x256xf32>
    %460 = arith.mulf %455, %455 : vector<8x256xf32>
    %cst_32 = arith.constant 1.000000e+00 : f32
    %461 = vector.broadcast %cst_32 : f32 to vector<8x256xf32>
    %462 = arith.subf %461, %460 : vector<8x256xf32>
    %463 = arith.mulf %459, %462 : vector<8x256xf32>
    %464 = arith.index_cast %c6_i32 : i32 to index
    %c0_33 = arith.constant 0 : index
    %c0_34 = arith.constant 0 : index
    %465 = vector.load %arg3[%464, %c0_33, %c0_34] : memref<10x8x256xbf16, #tpu.memory_space<vmem>>, vector<1x8x256xbf16>
    %466 = vector.shape_cast %465 : vector<1x8x256xbf16> to vector<8x256xbf16>
    %467 = arith.extf %466 : vector<8x256xbf16> to vector<8x256xf32>
    %468 = vector.broadcast %cst_7 : f32 to vector<8x256xf32>
    %469 = arith.mulf %467, %468 : vector<8x256xf32>
    %470 = vector.broadcast %cst : f32 to vector<8x256xf32>
    %471 = arith.mulf %454, %470 : vector<8x256xf32>
    %472 = arith.addf %416, %471 : vector<8x256xf32>
    %473 = arith.mulf %457, %469 : vector<8x256xf32>
    %474 = arith.addf %472, %473 : vector<8x256xf32>
    %cst_35 = arith.constant 5.000000e-01 : f32
    %475 = vector.broadcast %cst_35 : f32 to vector<8x256xf32>
    %476 = arith.mulf %475, %463 : vector<8x256xf32>
    %477 = arith.mulf %469, %469 : vector<8x256xf32>
    %478 = vector.broadcast %cst : f32 to vector<8x256xf32>
    %479 = arith.subf %477, %478 : vector<8x256xf32>
    %480 = arith.mulf %476, %479 : vector<8x256xf32>
    %481 = arith.addf %474, %480 : vector<8x256xf32>
    %c7_i32 = arith.constant 7 : i32
    %482 = arith.sitofp %c7_i32 : i32 to f32
    %483 = arith.mulf %cst, %482 : f32
    %484 = vector.extract_strided_slice %481 {offsets = [0, 0], sizes = [1, 256], strides = [1, 1]} : vector<8x256xf32> to vector<1x256xf32>
    %485 = vector.broadcast %484 : vector<1x256xf32> to vector<8x256xf32>
    %486 = arith.mulf %3, %485 : vector<8x256xf32>
    %487 = vector.extract_strided_slice %481 {offsets = [1, 0], sizes = [1, 256], strides = [1, 1]} : vector<8x256xf32> to vector<1x256xf32>
    %488 = vector.broadcast %487 : vector<1x256xf32> to vector<8x256xf32>
    %489 = arith.mulf %6, %488 : vector<8x256xf32>
    %490 = arith.addf %486, %489 : vector<8x256xf32>
    %491 = vector.extract_strided_slice %481 {offsets = [2, 0], sizes = [1, 256], strides = [1, 1]} : vector<8x256xf32> to vector<1x256xf32>
    %492 = vector.broadcast %491 : vector<1x256xf32> to vector<8x256xf32>
    %493 = arith.mulf %9, %492 : vector<8x256xf32>
    %494 = arith.addf %490, %493 : vector<8x256xf32>
    %495 = vector.extract_strided_slice %481 {offsets = [3, 0], sizes = [1, 256], strides = [1, 1]} : vector<8x256xf32> to vector<1x256xf32>
    %496 = vector.broadcast %495 : vector<1x256xf32> to vector<8x256xf32>
    %497 = arith.mulf %12, %496 : vector<8x256xf32>
    %498 = arith.addf %494, %497 : vector<8x256xf32>
    %499 = vector.extract_strided_slice %481 {offsets = [4, 0], sizes = [1, 256], strides = [1, 1]} : vector<8x256xf32> to vector<1x256xf32>
    %500 = vector.broadcast %499 : vector<1x256xf32> to vector<8x256xf32>
    %501 = arith.mulf %15, %500 : vector<8x256xf32>
    %502 = arith.addf %498, %501 : vector<8x256xf32>
    %503 = vector.extract_strided_slice %481 {offsets = [5, 0], sizes = [1, 256], strides = [1, 1]} : vector<8x256xf32> to vector<1x256xf32>
    %504 = vector.broadcast %503 : vector<1x256xf32> to vector<8x256xf32>
    %505 = arith.mulf %18, %504 : vector<8x256xf32>
    %506 = arith.addf %502, %505 : vector<8x256xf32>
    %507 = vector.extract_strided_slice %481 {offsets = [6, 0], sizes = [1, 256], strides = [1, 1]} : vector<8x256xf32> to vector<1x256xf32>
    %508 = vector.broadcast %507 : vector<1x256xf32> to vector<8x256xf32>
    %509 = arith.mulf %21, %508 : vector<8x256xf32>
    %510 = arith.addf %506, %509 : vector<8x256xf32>
    %511 = vector.extract_strided_slice %481 {offsets = [7, 0], sizes = [1, 256], strides = [1, 1]} : vector<8x256xf32> to vector<1x256xf32>
    %512 = vector.broadcast %511 : vector<1x256xf32> to vector<8x256xf32>
    %513 = arith.mulf %24, %512 : vector<8x256xf32>
    %514 = arith.addf %510, %513 : vector<8x256xf32>
    %515 = vector.broadcast %483 : f32 to vector<8x1xf32>
    %516 = arith.addf %25, %515 : vector<8x1xf32>
    %517 = vector.broadcast %516 : vector<8x1xf32> to vector<8x256xf32>
    %518 = arith.addf %514, %517 : vector<8x256xf32>
    %519 = math.tanh %518 : vector<8x256xf32>
    %520 = math.tanh %481 : vector<8x256xf32>
    %521 = vector.broadcast %cst_5 : f32 to vector<8x256xf32>
    %522 = arith.mulf %521, %520 : vector<8x256xf32>
    %523 = vector.broadcast %cst_6 : f32 to vector<8x256xf32>
    %524 = arith.mulf %523, %520 : vector<8x256xf32>
    %525 = arith.mulf %520, %520 : vector<8x256xf32>
    %cst_36 = arith.constant 1.000000e+00 : f32
    %526 = vector.broadcast %cst_36 : f32 to vector<8x256xf32>
    %527 = arith.subf %526, %525 : vector<8x256xf32>
    %528 = arith.mulf %524, %527 : vector<8x256xf32>
    %529 = arith.index_cast %c7_i32 : i32 to index
    %c0_37 = arith.constant 0 : index
    %c0_38 = arith.constant 0 : index
    %530 = vector.load %arg3[%529, %c0_37, %c0_38] : memref<10x8x256xbf16, #tpu.memory_space<vmem>>, vector<1x8x256xbf16>
    %531 = vector.shape_cast %530 : vector<1x8x256xbf16> to vector<8x256xbf16>
    %532 = arith.extf %531 : vector<8x256xbf16> to vector<8x256xf32>
    %533 = vector.broadcast %cst_7 : f32 to vector<8x256xf32>
    %534 = arith.mulf %532, %533 : vector<8x256xf32>
    %535 = vector.broadcast %cst : f32 to vector<8x256xf32>
    %536 = arith.mulf %519, %535 : vector<8x256xf32>
    %537 = arith.addf %481, %536 : vector<8x256xf32>
    %538 = arith.mulf %522, %534 : vector<8x256xf32>
    %539 = arith.addf %537, %538 : vector<8x256xf32>
    %cst_39 = arith.constant 5.000000e-01 : f32
    %540 = vector.broadcast %cst_39 : f32 to vector<8x256xf32>
    %541 = arith.mulf %540, %528 : vector<8x256xf32>
    %542 = arith.mulf %534, %534 : vector<8x256xf32>
    %543 = vector.broadcast %cst : f32 to vector<8x256xf32>
    %544 = arith.subf %542, %543 : vector<8x256xf32>
    %545 = arith.mulf %541, %544 : vector<8x256xf32>
    %546 = arith.addf %539, %545 : vector<8x256xf32>
    %c8_i32 = arith.constant 8 : i32
    %547 = arith.sitofp %c8_i32 : i32 to f32
    %548 = arith.mulf %cst, %547 : f32
    %549 = vector.extract_strided_slice %546 {offsets = [0, 0], sizes = [1, 256], strides = [1, 1]} : vector<8x256xf32> to vector<1x256xf32>
    %550 = vector.broadcast %549 : vector<1x256xf32> to vector<8x256xf32>
    %551 = arith.mulf %3, %550 : vector<8x256xf32>
    %552 = vector.extract_strided_slice %546 {offsets = [1, 0], sizes = [1, 256], strides = [1, 1]} : vector<8x256xf32> to vector<1x256xf32>
    %553 = vector.broadcast %552 : vector<1x256xf32> to vector<8x256xf32>
    %554 = arith.mulf %6, %553 : vector<8x256xf32>
    %555 = arith.addf %551, %554 : vector<8x256xf32>
    %556 = vector.extract_strided_slice %546 {offsets = [2, 0], sizes = [1, 256], strides = [1, 1]} : vector<8x256xf32> to vector<1x256xf32>
    %557 = vector.broadcast %556 : vector<1x256xf32> to vector<8x256xf32>
    %558 = arith.mulf %9, %557 : vector<8x256xf32>
    %559 = arith.addf %555, %558 : vector<8x256xf32>
    %560 = vector.extract_strided_slice %546 {offsets = [3, 0], sizes = [1, 256], strides = [1, 1]} : vector<8x256xf32> to vector<1x256xf32>
    %561 = vector.broadcast %560 : vector<1x256xf32> to vector<8x256xf32>
    %562 = arith.mulf %12, %561 : vector<8x256xf32>
    %563 = arith.addf %559, %562 : vector<8x256xf32>
    %564 = vector.extract_strided_slice %546 {offsets = [4, 0], sizes = [1, 256], strides = [1, 1]} : vector<8x256xf32> to vector<1x256xf32>
    %565 = vector.broadcast %564 : vector<1x256xf32> to vector<8x256xf32>
    %566 = arith.mulf %15, %565 : vector<8x256xf32>
    %567 = arith.addf %563, %566 : vector<8x256xf32>
    %568 = vector.extract_strided_slice %546 {offsets = [5, 0], sizes = [1, 256], strides = [1, 1]} : vector<8x256xf32> to vector<1x256xf32>
    %569 = vector.broadcast %568 : vector<1x256xf32> to vector<8x256xf32>
    %570 = arith.mulf %18, %569 : vector<8x256xf32>
    %571 = arith.addf %567, %570 : vector<8x256xf32>
    %572 = vector.extract_strided_slice %546 {offsets = [6, 0], sizes = [1, 256], strides = [1, 1]} : vector<8x256xf32> to vector<1x256xf32>
    %573 = vector.broadcast %572 : vector<1x256xf32> to vector<8x256xf32>
    %574 = arith.mulf %21, %573 : vector<8x256xf32>
    %575 = arith.addf %571, %574 : vector<8x256xf32>
    %576 = vector.extract_strided_slice %546 {offsets = [7, 0], sizes = [1, 256], strides = [1, 1]} : vector<8x256xf32> to vector<1x256xf32>
    %577 = vector.broadcast %576 : vector<1x256xf32> to vector<8x256xf32>
    %578 = arith.mulf %24, %577 : vector<8x256xf32>
    %579 = arith.addf %575, %578 : vector<8x256xf32>
    %580 = vector.broadcast %548 : f32 to vector<8x1xf32>
    %581 = arith.addf %25, %580 : vector<8x1xf32>
    %582 = vector.broadcast %581 : vector<8x1xf32> to vector<8x256xf32>
    %583 = arith.addf %579, %582 : vector<8x256xf32>
    %584 = math.tanh %583 : vector<8x256xf32>
    %585 = math.tanh %546 : vector<8x256xf32>
    %586 = vector.broadcast %cst_5 : f32 to vector<8x256xf32>
    %587 = arith.mulf %586, %585 : vector<8x256xf32>
    %588 = vector.broadcast %cst_6 : f32 to vector<8x256xf32>
    %589 = arith.mulf %588, %585 : vector<8x256xf32>
    %590 = arith.mulf %585, %585 : vector<8x256xf32>
    %cst_40 = arith.constant 1.000000e+00 : f32
    %591 = vector.broadcast %cst_40 : f32 to vector<8x256xf32>
    %592 = arith.subf %591, %590 : vector<8x256xf32>
    %593 = arith.mulf %589, %592 : vector<8x256xf32>
    %594 = arith.index_cast %c8_i32 : i32 to index
    %c0_41 = arith.constant 0 : index
    %c0_42 = arith.constant 0 : index
    %595 = vector.load %arg3[%594, %c0_41, %c0_42] : memref<10x8x256xbf16, #tpu.memory_space<vmem>>, vector<1x8x256xbf16>
    %596 = vector.shape_cast %595 : vector<1x8x256xbf16> to vector<8x256xbf16>
    %597 = arith.extf %596 : vector<8x256xbf16> to vector<8x256xf32>
    %598 = vector.broadcast %cst_7 : f32 to vector<8x256xf32>
    %599 = arith.mulf %597, %598 : vector<8x256xf32>
    %600 = vector.broadcast %cst : f32 to vector<8x256xf32>
    %601 = arith.mulf %584, %600 : vector<8x256xf32>
    %602 = arith.addf %546, %601 : vector<8x256xf32>
    %603 = arith.mulf %587, %599 : vector<8x256xf32>
    %604 = arith.addf %602, %603 : vector<8x256xf32>
    %cst_43 = arith.constant 5.000000e-01 : f32
    %605 = vector.broadcast %cst_43 : f32 to vector<8x256xf32>
    %606 = arith.mulf %605, %593 : vector<8x256xf32>
    %607 = arith.mulf %599, %599 : vector<8x256xf32>
    %608 = vector.broadcast %cst : f32 to vector<8x256xf32>
    %609 = arith.subf %607, %608 : vector<8x256xf32>
    %610 = arith.mulf %606, %609 : vector<8x256xf32>
    %611 = arith.addf %604, %610 : vector<8x256xf32>
    %c9_i32 = arith.constant 9 : i32
    %612 = arith.sitofp %c9_i32 : i32 to f32
    %613 = arith.mulf %cst, %612 : f32
    %614 = vector.extract_strided_slice %611 {offsets = [0, 0], sizes = [1, 256], strides = [1, 1]} : vector<8x256xf32> to vector<1x256xf32>
    %615 = vector.broadcast %614 : vector<1x256xf32> to vector<8x256xf32>
    %616 = arith.mulf %3, %615 : vector<8x256xf32>
    %617 = vector.extract_strided_slice %611 {offsets = [1, 0], sizes = [1, 256], strides = [1, 1]} : vector<8x256xf32> to vector<1x256xf32>
    %618 = vector.broadcast %617 : vector<1x256xf32> to vector<8x256xf32>
    %619 = arith.mulf %6, %618 : vector<8x256xf32>
    %620 = arith.addf %616, %619 : vector<8x256xf32>
    %621 = vector.extract_strided_slice %611 {offsets = [2, 0], sizes = [1, 256], strides = [1, 1]} : vector<8x256xf32> to vector<1x256xf32>
    %622 = vector.broadcast %621 : vector<1x256xf32> to vector<8x256xf32>
    %623 = arith.mulf %9, %622 : vector<8x256xf32>
    %624 = arith.addf %620, %623 : vector<8x256xf32>
    %625 = vector.extract_strided_slice %611 {offsets = [3, 0], sizes = [1, 256], strides = [1, 1]} : vector<8x256xf32> to vector<1x256xf32>
    %626 = vector.broadcast %625 : vector<1x256xf32> to vector<8x256xf32>
    %627 = arith.mulf %12, %626 : vector<8x256xf32>
    %628 = arith.addf %624, %627 : vector<8x256xf32>
    %629 = vector.extract_strided_slice %611 {offsets = [4, 0], sizes = [1, 256], strides = [1, 1]} : vector<8x256xf32> to vector<1x256xf32>
    %630 = vector.broadcast %629 : vector<1x256xf32> to vector<8x256xf32>
    %631 = arith.mulf %15, %630 : vector<8x256xf32>
    %632 = arith.addf %628, %631 : vector<8x256xf32>
    %633 = vector.extract_strided_slice %611 {offsets = [5, 0], sizes = [1, 256], strides = [1, 1]} : vector<8x256xf32> to vector<1x256xf32>
    %634 = vector.broadcast %633 : vector<1x256xf32> to vector<8x256xf32>
    %635 = arith.mulf %18, %634 : vector<8x256xf32>
    %636 = arith.addf %632, %635 : vector<8x256xf32>
    %637 = vector.extract_strided_slice %611 {offsets = [6, 0], sizes = [1, 256], strides = [1, 1]} : vector<8x256xf32> to vector<1x256xf32>
    %638 = vector.broadcast %637 : vector<1x256xf32> to vector<8x256xf32>
    %639 = arith.mulf %21, %638 : vector<8x256xf32>
    %640 = arith.addf %636, %639 : vector<8x256xf32>
    %641 = vector.extract_strided_slice %611 {offsets = [7, 0], sizes = [1, 256], strides = [1, 1]} : vector<8x256xf32> to vector<1x256xf32>
    %642 = vector.broadcast %641 : vector<1x256xf32> to vector<8x256xf32>
    %643 = arith.mulf %24, %642 : vector<8x256xf32>
    %644 = arith.addf %640, %643 : vector<8x256xf32>
    %645 = vector.broadcast %613 : f32 to vector<8x1xf32>
    %646 = arith.addf %25, %645 : vector<8x1xf32>
    %647 = vector.broadcast %646 : vector<8x1xf32> to vector<8x256xf32>
    %648 = arith.addf %644, %647 : vector<8x256xf32>
    %649 = math.tanh %648 : vector<8x256xf32>
    %650 = math.tanh %611 : vector<8x256xf32>
    %651 = vector.broadcast %cst_5 : f32 to vector<8x256xf32>
    %652 = arith.mulf %651, %650 : vector<8x256xf32>
    %653 = vector.broadcast %cst_6 : f32 to vector<8x256xf32>
    %654 = arith.mulf %653, %650 : vector<8x256xf32>
    %655 = arith.mulf %650, %650 : vector<8x256xf32>
    %cst_44 = arith.constant 1.000000e+00 : f32
    %656 = vector.broadcast %cst_44 : f32 to vector<8x256xf32>
    %657 = arith.subf %656, %655 : vector<8x256xf32>
    %658 = arith.mulf %654, %657 : vector<8x256xf32>
    %659 = arith.index_cast %c9_i32 : i32 to index
    %c0_45 = arith.constant 0 : index
    %c0_46 = arith.constant 0 : index
    %660 = vector.load %arg3[%659, %c0_45, %c0_46] : memref<10x8x256xbf16, #tpu.memory_space<vmem>>, vector<1x8x256xbf16>
    %661 = vector.shape_cast %660 : vector<1x8x256xbf16> to vector<8x256xbf16>
    %662 = arith.extf %661 : vector<8x256xbf16> to vector<8x256xf32>
    %663 = vector.broadcast %cst_7 : f32 to vector<8x256xf32>
    %664 = arith.mulf %662, %663 : vector<8x256xf32>
    %665 = vector.broadcast %cst : f32 to vector<8x256xf32>
    %666 = arith.mulf %649, %665 : vector<8x256xf32>
    %667 = arith.addf %611, %666 : vector<8x256xf32>
    %668 = arith.mulf %652, %664 : vector<8x256xf32>
    %669 = arith.addf %667, %668 : vector<8x256xf32>
    %cst_47 = arith.constant 5.000000e-01 : f32
    %670 = vector.broadcast %cst_47 : f32 to vector<8x256xf32>
    %671 = arith.mulf %670, %658 : vector<8x256xf32>
    %672 = arith.mulf %664, %664 : vector<8x256xf32>
    %673 = vector.broadcast %cst : f32 to vector<8x256xf32>
    %674 = arith.subf %672, %673 : vector<8x256xf32>
    %675 = arith.mulf %671, %674 : vector<8x256xf32>
    %676 = arith.addf %669, %675 : vector<8x256xf32>
    %c10_i32 = arith.constant 10 : i32
    %c0_48 = arith.constant 0 : index
    %c0_49 = arith.constant 0 : index
    %677 = vector.load %arg4[%c0_48, %c0_49] : memref<8x256xf32, #tpu.memory_space<vmem>>, vector<8x256xf32>
    tpu.vector_store %arg4[%c0_48, %c0_49], %676 {strides = array<i32>} : memref<8x256xf32, #tpu.memory_space<vmem>>, vector<8x256xf32>,
    return
  }
}

</mosaic_0001>

<llo_original>
// kernel: tile.8
$region0: #{tile.8}
  #allocation0 [shape = 's32[1]{0}', space=sflag, size = 0x4, scoped, tag = 'scoped memory for tile.8']
  %s0 = inlined_call_operand.vmem [shape: f32[4], index: 0, kind: input, shape index: {}]
  %s1 = inlined_call_operand.vmem [shape: f32[2,4], index: 1, kind: output, shape index: {}]
  // Predicated region
  $region2: #{tile.8} parent=0 // pred_check
    _
  $region3: #{tile.8} parent=0 // pred_check_branch
    %3 = sbr.rel (0) target = $region5
  $region4: #{tile.8} parent=0 // pred_region
    _
  $region5: #{tile.8} parent=0 // pred_fallthru
    _
  %v4 = vld [vmem:[%s0] ss:$0 sm:$0xff]
  %5 = vst [vmem:[%s1] sm:$0x3] %v4

// kernel: tile.0
$region0: #{tile.0}
  %s0 = inlined_call_operand.vmem [shape: f32[2,4], index: 0, kind: input, shape index: {}]
  %s1 = inlined_call_operand.vmem [shape: f32[8,1], index: 1, kind: output, shape index: {}]
  $region1: #{tile.0} parent=0
    #allocation0 [shape = 'u8[4096]{0}', space=vmem, size = 0x1000, scoped, tag = 'scoped mem for input reshape']
    %s3 = sshll.u32 1, 2
    %s4 = ssub.s32 %s3, 1
    %v5 = vld [vmem:[%s0] sm:%s4]
    %6 = vst [vmem:[#allocation0] sm:%s4] %v5
    %v7 = vld [vmem:[#allocation0] sm:$0x3]
    %vm8 = vcmask 7168
    %9 = vst.msk [vmem:[%s1] ss:$4 sm:$0x3] %vm8, %v7
    %v10 = vld [vmem:[#allocation0] sm:$0x3]
    %11 = vrot.lane.b32.xlu0 %v10, 127
    %v12 = vpop.permute.xlu0 %11
    %vm13 = vcmask 7168
    %s14 = scalar_lea.vmem %s1, 1
    %15 = vst.msk [vmem:[%s14] ss:$4 sm:$0x3] %vm13, %v12
    %v16 = vld [vmem:[#allocation0] sm:$0x3]
    %17 = vrot.lane.b32.xlu0 %v16, 126
    %v18 = vpop.permute.xlu0 %17
    %vm19 = vcmask 7168
    %s20 = scalar_lea.vmem %s1, 2
    %21 = vst.msk [vmem:[%s20] ss:$4 sm:$0x3] %vm19, %v18
    %v22 = vld [vmem:[#allocation0] sm:$0x3]
    %23 = vrot.lane.b32.xlu0 %v22, 125
    %v24 = vpop.permute.xlu0 %23
    %vm25 = vcmask 7168
    %s26 = scalar_lea.vmem %s1, 3
    %27 = vst.msk [vmem:[%s26] ss:$4 sm:$0x3] %vm25, %v24

// kernel: sde_block_forward.1
$region0: #{sde_block_forward.1}
  #allocation0 [shape = 'u32[]', space=smem, size = 0x4, offset = 0x4, fixed_abs, tag = 'smem constant byte address 0x4 - core index']
  #allocation1 [shape = 'u32[144,128]{1,0:T(1,128)}', space=vmem, size = 0x12000, scoped, tag = 'internal scratch']
  %s0 = inlined_call_operand.vmem [shape: f32[8,256], index: 0, kind: input, shape index: {}, may-alias: {0,4}]
  %s1 = inlined_call_operand.vmem [shape: f32[8,8], index: 1, kind: input, shape index: {}]
  %s2 = inlined_call_operand.vmem [shape: f32[8,1], index: 2, kind: input, shape index: {}]
  %s3 = inlined_call_operand.vmem [shape: bf16[10,8,256], index: 3, kind: input, shape index: {}]
  %s4 = inlined_call_operand.vmem [shape: f32[8,256], index: 4, kind: output, shape index: {}, may-alias: {0,4}]
  %s5 = sld [smem:[#allocation0]]
  $region26: #{sde_block_forward.1} parent=0
    _
  %s7 = ssub.s32 1, %s5
  %s8 = scalar_select 0, %s7, %s5
  // Predicated region
  $region2: #{sde_block_forward.1} parent=0 // pred_check
    _
  $region3: #{sde_block_forward.1} parent=0 // pred_check_branch
    %10 = sbr.rel (0) target = $region5
  $region4: #{sde_block_forward.1} parent=0 // pred_region
    _
  $region5: #{sde_block_forward.1} parent=0 // pred_fallthru
    _
  // Predicated region
  $region6: #{sde_block_forward.1} parent=0 // pred_check
    _
  $region7: #{sde_block_forward.1} parent=0 // pred_check_branch
    %12 = sbr.rel (0) target = $region9
  $region8: #{sde_block_forward.1} parent=0 // pred_region
    _
  $region9: #{sde_block_forward.1} parent=0 // pred_fallthru
    _
  // Predicated region
  $region10: #{sde_block_forward.1} parent=0 // pred_check
    _
  $region11: #{sde_block_forward.1} parent=0 // pred_check_branch
    %14 = sbr.rel (0) target = $region13
  $region12: #{sde_block_forward.1} parent=0 // pred_region
    _
  $region13: #{sde_block_forward.1} parent=0 // pred_fallthru
    _
  // Predicated region
  $region14: #{sde_block_forward.1} parent=0 // pred_check
    _
  $region15: #{sde_block_forward.1} parent=0 // pred_check_branch
    %16 = sbr.rel (0) target = $region17
  $region16: #{sde_block_forward.1} parent=0 // pred_region
    _
  $region17: #{sde_block_forward.1} parent=0 // pred_fallthru
    _
  %v17 = vld [vmem:[%s1] sm:$0xff]
  %19 = vset.pattern.permute.xlu0 0
  %20 = vperm.xlu0 %19, %v17
  %v21 = vpop.permute.xlu0 %20
  %23 = vset.pattern.permute.xlu0 1
  %24 = vperm.xlu0 %23, %v17
  %v25 = vpop.permute.xlu0 %24
  %27 = vset.pattern.permute.xlu0 2
  %28 = vperm.xlu0 %27, %v17
  %v29 = vpop.permute.xlu0 %28
  %31 = vset.pattern.permute.xlu0 3
  %32 = vperm.xlu0 %31, %v17
  %v33 = vpop.permute.xlu0 %32
  %35 = vset.pattern.permute.xlu0 4
  %36 = vperm.xlu0 %35, %v17
  %v37 = vpop.permute.xlu0 %36
  %39 = vset.pattern.permute.xlu0 5
  %40 = vperm.xlu0 %39, %v17
  %v41 = vpop.permute.xlu0 %40
  %43 = vset.pattern.permute.xlu0 6
  %44 = vperm.xlu0 %43, %v17
  %v45 = vpop.permute.xlu0 %44
  %47 = vset.pattern.permute.xlu0 7
  %48 = vperm.xlu0 %47, %v17
  %v49 = vpop.permute.xlu0 %48
  %v51 = vld [vmem:[%s2] sm:$0xff]
  %v52 = vld [vmem:[%s0] sm:$0xff]
  %v53 = vld [vmem:[%s0 + $0x8] sm:$0xff]
  %v54 = vlaneseq
  %v55 = vshrl.u32 %v54, 7
  %v56 = vsub.s32 0, %v55
  %v57 = vrot.slane %v52, %v56
  %v58 = vlaneseq
  %v59 = vshrl.u32 %v58, 7
  %v60 = vsub.s32 0, %v59
  %v61 = vrot.slane %v53, %v60
  %v62 = vmul.f32 %v21, %v57
  %v63 = vmul.f32 %v21, %v61
  %v64 = vlaneseq
  %v65 = vshrl.u32 %v64, 7
  %v66 = vsub.s32 1, %v65
  %v67 = vrot.slane %v52, %v66
  %v68 = vlaneseq
  %v69 = vshrl.u32 %v68, 7
  %v70 = vsub.s32 1, %v69
  %v71 = vrot.slane %v53, %v70
  %v72 = vmul.f32 %v25, %v67
  %v73 = vmul.f32 %v25, %v71
  %v74 = vadd.f32 %v62, %v72
  %v75 = vadd.f32 %v63, %v73
  %v76 = vlaneseq
  %v77 = vshrl.u32 %v76, 7
  %v78 = vsub.s32 2, %v77
  %v79 = vrot.slane %v52, %v78
  %v80 = vlaneseq
  %v81 = vshrl.u32 %v80, 7
  %v82 = vsub.s32 2, %v81
  %v83 = vrot.slane %v53, %v82
  %v84 = vmul.f32 %v29, %v79
  %v85 = vmul.f32 %v29, %v83
  %v86 = vadd.f32 %v74, %v84
  %v87 = vadd.f32 %v75, %v85
  %v88 = vlaneseq
  %v89 = vshrl.u32 %v88, 7
  %v90 = vsub.s32 3, %v89
  %v91 = vrot.slane %v52, %v90
  %v92 = vlaneseq
  %v93 = vshrl.u32 %v92, 7
  %v94 = vsub.s32 3, %v93
  %v95 = vrot.slane %v53, %v94
  %v96 = vmul.f32 %v33, %v91
  %v97 = vmul.f32 %v33, %v95
  %v98 = vadd.f32 %v86, %v96
  %v99 = vadd.f32 %v87, %v97
  %v100 = vlaneseq
  %v101 = vshrl.u32 %v100, 7
  %v102 = vsub.s32 4, %v101
  %v103 = vrot.slane %v52, %v102
  %v104 = vlaneseq
  %v105 = vshrl.u32 %v104, 7
  %v106 = vsub.s32 4, %v105
  %v107 = vrot.slane %v53, %v106
  %v108 = vmul.f32 %v37, %v103
  %v109 = vmul.f32 %v37, %v107
  %v110 = vadd.f32 %v98, %v108
  %v111 = vadd.f32 %v99, %v109
  %v112 = vlaneseq
  %v113 = vshrl.u32 %v112, 7
  %v114 = vsub.s32 5, %v113
  %v115 = vrot.slane %v52, %v114
  %v116 = vlaneseq
  %v117 = vshrl.u32 %v116, 7
  %v118 = vsub.s32 5, %v117
  %v119 = vrot.slane %v53, %v118
  %v120 = vmul.f32 %v41, %v115
  %v121 = vmul.f32 %v41, %v119
  %v122 = vadd.f32 %v110, %v120
  %v123 = vadd.f32 %v111, %v121
  %v124 = vlaneseq
  %v125 = vshrl.u32 %v124, 7
  %v126 = vsub.s32 6, %v125
  %v127 = vrot.slane %v52, %v126
  %v128 = vlaneseq
  %v129 = vshrl.u32 %v128, 7
  %v130 = vsub.s32 6, %v129
  %v131 = vrot.slane %v53, %v130
  %v132 = vmul.f32 %v45, %v127
  %v133 = vmul.f32 %v45, %v131
  %v134 = vadd.f32 %v122, %v132
  %v135 = vadd.f32 %v123, %v133
  %v136 = vlaneseq
  %v137 = vshrl.u32 %v136, 7
  %v138 = vsub.s32 7, %v137
  %v139 = vrot.slane %v52, %v138
  %v140 = vlaneseq
  %v141 = vshrl.u32 %v140, 7
  %v142 = vsub.s32 7, %v141
  %v143 = vrot.slane %v53, %v142
  %v144 = vmul.f32 %v49, %v139
  %v145 = vmul.f32 %v49, %v143
  %v146 = vadd.f32 %v134, %v144
  %v147 = vadd.f32 %v135, %v145
  %v148 = vadd.f32 %v51, 0.0
  %150 = vset.pattern.permute.xlu0 0
  %151 = vperm.xlu0 %150, %v148
  %v152 = vpop.permute.xlu0 %151
  %v154 = vadd.f32 %v146, %v152
  %v155 = vadd.f32 %v147, %v152
  %v156 = vtanh.pop %v154
  %v157 = vtanh.pop %v155
  %v158 = vtanh.pop %v52
  %v159 = vtanh.pop %v53
  %v160 = vmul.f32 %v158, 0.2
  %v161 = vmul.f32 %v159, 0.2
  %v162 = vmul.f32 %v158, 0.04
  %v163 = vmul.f32 %v159, 0.04
  %v164 = vmul.f32 %v158, %v158
  %v165 = vmul.f32 %v159, %v159
  %v166 = vsub.f32 1.0, %v164
  %v167 = vsub.f32 1.0, %v165
  %v168 = vmul.f32 %v162, %v166
  %v169 = vmul.f32 %v163, %v167
  %v170 = vld [vmem:[%s3] sm:$0xff]
  %v171 = vunpack.c.l.bf16 %v170
  %v172 = vunpack.c.h.bf16 %v170
  %v173 = vmul.f32 %v171, 0.31622776
  %v174 = vmul.f32 %v172, 0.31622776
  %v175 = vmul.f32 %v156, 0.1
  %v176 = vmul.f32 %v157, 0.1
  %v177 = vadd.f32 %v52, %v175
  %v178 = vadd.f32 %v53, %v176
  %v179 = vmul.f32 %v160, %v173
  %v180 = vmul.f32 %v161, %v174
  %v181 = vadd.f32 %v177, %v179
  %v182 = vadd.f32 %v178, %v180
  %v183 = vmul.f32 %v168, 0.5
  %v184 = vmul.f32 %v169, 0.5
  %v185 = vmul.f32 %v173, %v173
  %v186 = vmul.f32 %v174, %v174
  %v187 = vsub.f32 %v185, 0.1
  %v188 = vsub.f32 %v186, 0.1
  %v189 = vmul.f32 %v183, %v187
  %v190 = vmul.f32 %v184, %v188
  %v191 = vadd.f32 %v181, %v189
  %v192 = vadd.f32 %v182, %v190
  %v193 = vlaneseq
  %v194 = vshrl.u32 %v193, 7
  %v195 = vsub.s32 0, %v194
  %v196 = vrot.slane %v191, %v195
  %v197 = vlaneseq
  %v198 = vshrl.u32 %v197, 7
  %v199 = vsub.s32 0, %v198
  %v200 = vrot.slane %v192, %v199
  %v201 = vmul.f32 %v21, %v196
  %v202 = vmul.f32 %v21, %v200
  %v203 = vlaneseq
  %v204 = vshrl.u32 %v203, 7
  %v205 = vsub.s32 1, %v204
  %v206 = vrot.slane %v191, %v205
  %v207 = vlaneseq
  %v208 = vshrl.u32 %v207, 7
  %v209 = vsub.s32 1, %v208
  %v210 = vrot.slane %v192, %v209
  %v211 = vmul.f32 %v25, %v206
  %v212 = vmul.f32 %v25, %v210
  %v213 = vadd.f32 %v201, %v211
  %v214 = vadd.f32 %v202, %v212
  %v215 = vlaneseq
  %v216 = vshrl.u32 %v215, 7
  %v217 = vsub.s32 2, %v216
  %v218 = vrot.slane %v191, %v217
  %v219 = vlaneseq
  %v220 = vshrl.u32 %v219, 7
  %v221 = vsub.s32 2, %v220
  %v222 = vrot.slane %v192, %v221
  %v223 = vmul.f32 %v29, %v218
  %v224 = vmul.f32 %v29, %v222
  %v225 = vadd.f32 %v213, %v223
  %v226 = vadd.f32 %v214, %v224
  %v227 = vlaneseq
  %v228 = vshrl.u32 %v227, 7
  %v229 = vsub.s32 3, %v228
  %v230 = vrot.slane %v191, %v229
  %v231 = vlaneseq
  %v232 = vshrl.u32 %v231, 7
  %v233 = vsub.s32 3, %v232
  %v234 = vrot.slane %v192, %v233
  %v235 = vmul.f32 %v33, %v230
  %v236 = vmul.f32 %v33, %v234
  %v237 = vadd.f32 %v225, %v235
  %v238 = vadd.f32 %v226, %v236
  %v239 = vlaneseq
  %v240 = vshrl.u32 %v239, 7
  %v241 = vsub.s32 4, %v240
  %v242 = vrot.slane %v191, %v241
  %v243 = vlaneseq
  %v244 = vshrl.u32 %v243, 7
  %v245 = vsub.s32 4, %v244
  %v246 = vrot.slane %v192, %v245
  %v247 = vmul.f32 %v37, %v242
  %v248 = vmul.f32 %v37, %v246
  %v249 = vadd.f32 %v237, %v247
  %v250 = vadd.f32 %v238, %v248
  %v251 = vlaneseq
  %v252 = vshrl.u32 %v251, 7
  %v253 = vsub.s32 5, %v252
  %v254 = vrot.slane %v191, %v253
  %v255 = vlaneseq
  %v256 = vshrl.u32 %v255, 7
  %v257 = vsub.s32 5, %v256
  %v258 = vrot.slane %v192, %v257
  %v259 = vmul.f32 %v41, %v254
  %v260 = vmul.f32 %v41, %v258
  %v261 = vadd.f32 %v249, %v259
  %v262 = vadd.f32 %v250, %v260
  %v263 = vlaneseq
  %v264 = vshrl.u32 %v263, 7
  %v265 = vsub.s32 6, %v264
  %v266 = vrot.slane %v191, %v265
  %v267 = vlaneseq
  %v268 = vshrl.u32 %v267, 7
  %v269 = vsub.s32 6, %v268
  %v270 = vrot.slane %v192, %v269
  %v271 = vmul.f32 %v45, %v266
  %v272 = vmul.f32 %v45, %v270
  %v273 = vadd.f32 %v261, %v271
  %v274 = vadd.f32 %v262, %v272
  %v275 = vlaneseq
  %v276 = vshrl.u32 %v275, 7
  %v277 = vsub.s32 7, %v276
  %v278 = vrot.slane %v191, %v277
  %v279 = vlaneseq
  %v280 = vshrl.u32 %v279, 7
  %v281 = vsub.s32 7, %v280
  %v282 = vrot.slane %v192, %v281
  %v283 = vmul.f32 %v49, %v278
  %v284 = vmul.f32 %v49, %v282
  %v285 = vadd.f32 %v273, %v283
  %v286 = vadd.f32 %v274, %v284
  %v287 = vadd.f32 %v51, 0.1
  %289 = vset.pattern.permute.xlu0 0
  %290 = vperm.xlu0 %289, %v287
  %v291 = vpop.permute.xlu0 %290
  %v293 = vadd.f32 %v285, %v291
  %v294 = vadd.f32 %v286, %v291
  %v295 = vtanh.pop %v293
  %v296 = vtanh.pop %v294
  %v297 = vtanh.pop %v191
  %v298 = vtanh.pop %v192
  %v299 = vmul.f32 %v297, 0.2
  %v300 = vmul.f32 %v298, 0.2
  %v301 = vmul.f32 %v297, 0.04
  %v302 = vmul.f32 %v298, 0.04
  %v303 = vmul.f32 %v297, %v297
  %v304 = vmul.f32 %v298, %v298
  %v305 = vsub.f32 1.0, %v303
  %v306 = vsub.f32 1.0, %v304
  %v307 = vmul.f32 %v301, %v305
  %v308 = vmul.f32 %v302, %v306
  %s309 = scalar_lea.vmem %s3, 8
  %v310 = vld [vmem:[%s309] sm:$0xff]
  %v311 = vunpack.c.l.bf16 %v310
  %v312 = vunpack.c.h.bf16 %v310
  %v313 = vmul.f32 %v311, 0.31622776
  %v314 = vmul.f32 %v312, 0.31622776
  %v315 = vmul.f32 %v295, 0.1
  %v316 = vmul.f32 %v296, 0.1
  %v317 = vadd.f32 %v191, %v315
  %v318 = vadd.f32 %v192, %v316
  %v319 = vmul.f32 %v299, %v313
  %v320 = vmul.f32 %v300, %v314
  %v321 = vadd.f32 %v317, %v319
  %v322 = vadd.f32 %v318, %v320
  %v323 = vmul.f32 %v307, 0.5
  %v324 = vmul.f32 %v308, 0.5
  %v325 = vmul.f32 %v313, %v313
  %v326 = vmul.f32 %v314, %v314
  %v327 = vsub.f32 %v325, 0.1
  %v328 = vsub.f32 %v326, 0.1
  %v329 = vmul.f32 %v323, %v327
  %v330 = vmul.f32 %v324, %v328
  %v331 = vadd.f32 %v321, %v329
  %v332 = vadd.f32 %v322, %v330
  %v333 = vlaneseq
  %v334 = vshrl.u32 %v333, 7
  %v335 = vsub.s32 0, %v334
  %v336 = vrot.slane %v331, %v335
  %v337 = vlaneseq
  %v338 = vshrl.u32 %v337, 7
  %v339 = vsub.s32 0, %v338
  %v340 = vrot.slane %v332, %v339
  %v341 = vmul.f32 %v21, %v336
  %v342 = vmul.f32 %v21, %v340
  %v343 = vlaneseq
  %v344 = vshrl.u32 %v343, 7
  %v345 = vsub.s32 1, %v344
  %v346 = vrot.slane %v331, %v345
  %v347 = vlaneseq
  %v348 = vshrl.u32 %v347, 7
  %v349 = vsub.s32 1, %v348
  %v350 = vrot.slane %v332, %v349
  %v351 = vmul.f32 %v25, %v346
  %v352 = vmul.f32 %v25, %v350
  %v353 = vadd.f32 %v341, %v351
  %v354 = vadd.f32 %v342, %v352
  %v355 = vlaneseq
  %v356 = vshrl.u32 %v355, 7
  %v357 = vsub.s32 2, %v356
  %v358 = vrot.slane %v331, %v357
  %v359 = vlaneseq
  %v360 = vshrl.u32 %v359, 7
  %v361 = vsub.s32 2, %v360
  %v362 = vrot.slane %v332, %v361
  %v363 = vmul.f32 %v29, %v358
  %v364 = vmul.f32 %v29, %v362
  %v365 = vadd.f32 %v353, %v363
  %v366 = vadd.f32 %v354, %v364
  %v367 = vlaneseq
  %v368 = vshrl.u32 %v367, 7
  %v369 = vsub.s32 3, %v368
  %v370 = vrot.slane %v331, %v369
  %v371 = vlaneseq
  %v372 = vshrl.u32 %v371, 7
  %v373 = vsub.s32 3, %v372
  %v374 = vrot.slane %v332, %v373
  %v375 = vmul.f32 %v33, %v370
  %v376 = vmul.f32 %v33, %v374
  %v377 = vadd.f32 %v365, %v375
  %v378 = vadd.f32 %v366, %v376
  %v379 = vlaneseq
  %v380 = vshrl.u32 %v379, 7
  %v381 = vsub.s32 4, %v380
  %v382 = vrot.slane %v331, %v381
  %v383 = vlaneseq
  %v384 = vshrl.u32 %v383, 7
  %v385 = vsub.s32 4, %v384
  %v386 = vrot.slane %v332, %v385
  %v387 = vmul.f32 %v37, %v382
  %v388 = vmul.f32 %v37, %v386
  %v389 = vadd.f32 %v377, %v387
  %v390 = vadd.f32 %v378, %v388
  %v391 = vlaneseq
  %v392 = vshrl.u32 %v391, 7
  %v393 = vsub.s32 5, %v392
  %v394 = vrot.slane %v331, %v393
  %v395 = vlaneseq
  %v396 = vshrl.u32 %v395, 7
  %v397 = vsub.s32 5, %v396
  %v398 = vrot.slane %v332, %v397
  %v399 = vmul.f32 %v41, %v394
  %v400 = vmul.f32 %v41, %v398
  %v401 = vadd.f32 %v389, %v399
  %v402 = vadd.f32 %v390, %v400
  %v403 = vlaneseq
  %v404 = vshrl.u32 %v403, 7
  %v405 = vsub.s32 6, %v404
  %v406 = vrot.slane %v331, %v405
  %v407 = vlaneseq
  %v408 = vshrl.u32 %v407, 7
  %v409 = vsub.s32 6, %v408
  %v410 = vrot.slane %v332, %v409
  %v411 = vmul.f32 %v45, %v406
  %v412 = vmul.f32 %v45, %v410
  %v413 = vadd.f32 %v401, %v411
  %v414 = vadd.f32 %v402, %v412
  %v415 = vlaneseq
  %v416 = vshrl.u32 %v415, 7
  %v417 = vsub.s32 7, %v416
  %v418 = vrot.slane %v331, %v417
  %v419 = vlaneseq
  %v420 = vshrl.u32 %v419, 7
  %v421 = vsub.s32 7, %v420
  %v422 = vrot.slane %v332, %v421
  %v423 = vmul.f32 %v49, %v418
  %v424 = vmul.f32 %v49, %v422
  %v425 = vadd.f32 %v413, %v423
  %v426 = vadd.f32 %v414, %v424
  %v427 = vadd.f32 %v51, 0.2
  %429 = vset.pattern.permute.xlu0 0
  %430 = vperm.xlu0 %429, %v427
  %v431 = vpop.permute.xlu0 %430
  %v433 = vadd.f32 %v425, %v431
  %v434 = vadd.f32 %v426, %v431
  %v435 = vtanh.pop %v433
  %v436 = vtanh.pop %v434
  %v437 = vtanh.pop %v331
  %v438 = vtanh.pop %v332
  %v439 = vmul.f32 %v437, 0.2
  %v440 = vmul.f32 %v438, 0.2
  %v441 = vmul.f32 %v437, 0.04
  %v442 = vmul.f32 %v438, 0.04
  %v443 = vmul.f32 %v437, %v437
  %v444 = vmul.f32 %v438, %v438
  %v445 = vsub.f32 1.0, %v443
  %v446 = vsub.f32 1.0, %v444
  %v447 = vmul.f32 %v441, %v445
  %v448 = vmul.f32 %v442, %v446
  %s449 = scalar_lea.vmem %s3, 16
  %v450 = vld [vmem:[%s449] sm:$0xff]
  %v451 = vunpack.c.l.bf16 %v450
  %v452 = vunpack.c.h.bf16 %v450
  %v453 = vmul.f32 %v451, 0.31622776
  %v454 = vmul.f32 %v452, 0.31622776
  %v455 = vmul.f32 %v435, 0.1
  %v456 = vmul.f32 %v436, 0.1
  %v457 = vadd.f32 %v331, %v455
  %v458 = vadd.f32 %v332, %v456
  %v459 = vmul.f32 %v439, %v453
  %v460 = vmul.f32 %v440, %v454
  %v461 = vadd.f32 %v457, %v459
  %v462 = vadd.f32 %v458, %v460
  %v463 = vmul.f32 %v447, 0.5
  %v464 = vmul.f32 %v448, 0.5
  %v465 = vmul.f32 %v453, %v453
  %v466 = vmul.f32 %v454, %v454
  %v467 = vsub.f32 %v465, 0.1
  %v468 = vsub.f32 %v466, 0.1
  %v469 = vmul.f32 %v463, %v467
  %v470 = vmul.f32 %v464, %v468
  %v471 = vadd.f32 %v461, %v469
  %v472 = vadd.f32 %v462, %v470
  %v473 = vlaneseq
  %v474 = vshrl.u32 %v473, 7
  %v475 = vsub.s32 0, %v474
  %v476 = vrot.slane %v471, %v475
  %v477 = vlaneseq
  %v478 = vshrl.u32 %v477, 7
  %v479 = vsub.s32 0, %v478
  %v480 = vrot.slane %v472, %v479
  %v481 = vmul.f32 %v21, %v476
  %v482 = vmul.f32 %v21, %v480
  %v483 = vlaneseq
  %v484 = vshrl.u32 %v483, 7
  %v485 = vsub.s32 1, %v484
  %v486 = vrot.slane %v471, %v485
  %v487 = vlaneseq
  %v488 = vshrl.u32 %v487, 7
  %v489 = vsub.s32 1, %v488
  %v490 = vrot.slane %v472, %v489
  %v491 = vmul.f32 %v25, %v486
  %v492 = vmul.f32 %v25, %v490
  %v493 = vadd.f32 %v481, %v491
  %v494 = vadd.f32 %v482, %v492
  %v495 = vlaneseq
  %v496 = vshrl.u32 %v495, 7
  %v497 = vsub.s32 2, %v496
  %v498 = vrot.slane %v471, %v497
  %v499 = vlaneseq
  %v500 = vshrl.u32 %v499, 7
  %v501 = vsub.s32 2, %v500
  %v502 = vrot.slane %v472, %v501
  %v503 = vmul.f32 %v29, %v498
  %v504 = vmul.f32 %v29, %v502
  %v505 = vadd.f32 %v493, %v503
  %v506 = vadd.f32 %v494, %v504
  %v507 = vlaneseq
  %v508 = vshrl.u32 %v507, 7
  %v509 = vsub.s32 3, %v508
  %v510 = vrot.slane %v471, %v509
  %v511 = vlaneseq
  %v512 = vshrl.u32 %v511, 7
  %v513 = vsub.s32 3, %v512
  %v514 = vrot.slane %v472, %v513
  %v515 = vmul.f32 %v33, %v510
  %v516 = vmul.f32 %v33, %v514
  %v517 = vadd.f32 %v505, %v515
  %v518 = vadd.f32 %v506, %v516
  %v519 = vlaneseq
  %v520 = vshrl.u32 %v519, 7
  %v521 = vsub.s32 4, %v520
  %v522 = vrot.slane %v471, %v521
  %v523 = vlaneseq
  %v524 = vshrl.u32 %v523, 7
  %v525 = vsub.s32 4, %v524
  %v526 = vrot.slane %v472, %v525
  %v527 = vmul.f32 %v37, %v522
  %v528 = vmul.f32 %v37, %v526
  %v529 = vadd.f32 %v517, %v527
  %v530 = vadd.f32 %v518, %v528
  %v531 = vlaneseq
  %v532 = vshrl.u32 %v531, 7
  %v533 = vsub.s32 5, %v532
  %v534 = vrot.slane %v471, %v533
  %v535 = vlaneseq
  %v536 = vshrl.u32 %v535, 7
  %v537 = vsub.s32 5, %v536
  %v538 = vrot.slane %v472, %v537
  %v539 = vmul.f32 %v41, %v534
  %v540 = vmul.f32 %v41, %v538
  %v541 = vadd.f32 %v529, %v539
  %v542 = vadd.f32 %v530, %v540
  %v543 = vlaneseq
  %v544 = vshrl.u32 %v543, 7
  %v545 = vsub.s32 6, %v544
  %v546 = vrot.slane %v471, %v545
  %v547 = vlaneseq
  %v548 = vshrl.u32 %v547, 7
  %v549 = vsub.s32 6, %v548
  %v550 = vrot.slane %v472, %v549
  %v551 = vmul.f32 %v45, %v546
  %v552 = vmul.f32 %v45, %v550
  %v553 = vadd.f32 %v541, %v551
  %v554 = vadd.f32 %v542, %v552
  %v555 = vlaneseq
  %v556 = vshrl.u32 %v555, 7
  %v557 = vsub.s32 7, %v556
  %v558 = vrot.slane %v471, %v557
  %v559 = vlaneseq
  %v560 = vshrl.u32 %v559, 7
  %v561 = vsub.s32 7, %v560
  %v562 = vrot.slane %v472, %v561
  %v563 = vmul.f32 %v49, %v558
  %v564 = vmul.f32 %v49, %v562
  %v565 = vadd.f32 %v553, %v563
  %v566 = vadd.f32 %v554, %v564
  %v567 = vadd.f32 %v51, 0.3
  %569 = vset.pattern.permute.xlu0 0
  %570 = vperm.xlu0 %569, %v567
  %v571 = vpop.permute.xlu0 %570
  %v573 = vadd.f32 %v565, %v571
  %v574 = vadd.f32 %v566, %v571
  %v575 = vtanh.pop %v573
  %v576 = vtanh.pop %v574
  %v577 = vtanh.pop %v471
  %v578 = vtanh.pop %v472
  %v579 = vmul.f32 %v577, 0.2
  %v580 = vmul.f32 %v578, 0.2
  %v581 = vmul.f32 %v577, 0.04
  %v582 = vmul.f32 %v578, 0.04
  %v583 = vmul.f32 %v577, %v577
  %v584 = vmul.f32 %v578, %v578
  %v585 = vsub.f32 1.0, %v583
  %v586 = vsub.f32 1.0, %v584
  %v587 = vmul.f32 %v581, %v585
  %v588 = vmul.f32 %v582, %v586
  %s589 = scalar_lea.vmem %s3, 24
  %v590 = vld [vmem:[%s589] sm:$0xff]
  %v591 = vunpack.c.l.bf16 %v590
  %v592 = vunpack.c.h.bf16 %v590
  %v593 = vmul.f32 %v591, 0.31622776
  %v594 = vmul.f32 %v592, 0.31622776
  %v595 = vmul.f32 %v575, 0.1
  %v596 = vmul.f32 %v576, 0.1
  %v597 = vadd.f32 %v471, %v595
  %v598 = vadd.f32 %v472, %v596
  %v599 = vmul.f32 %v579, %v593
  %v600 = vmul.f32 %v580, %v594
  %v601 = vadd.f32 %v597, %v599
  %v602 = vadd.f32 %v598, %v600
  %v603 = vmul.f32 %v587, 0.5
  %v604 = vmul.f32 %v588, 0.5
  %v605 = vmul.f32 %v593, %v593
  %v606 = vmul.f32 %v594, %v594
  %v607 = vsub.f32 %v605, 0.1
  %v608 = vsub.f32 %v606, 0.1
  %v609 = vmul.f32 %v603, %v607
  %v610 = vmul.f32 %v604, %v608
  %v611 = vadd.f32 %v601, %v609
  %v612 = vadd.f32 %v602, %v610
  %v613 = vlaneseq
  %v614 = vshrl.u32 %v613, 7
  %v615 = vsub.s32 0, %v614
  %v616 = vrot.slane %v611, %v615
  %v617 = vlaneseq
  %v618 = vshrl.u32 %v617, 7
  %v619 = vsub.s32 0, %v618
  %v620 = vrot.slane %v612, %v619
  %v621 = vmul.f32 %v21, %v616
  %v622 = vmul.f32 %v21, %v620
  %v623 = vlaneseq
  %v624 = vshrl.u32 %v623, 7
  %v625 = vsub.s32 1, %v624
  %v626 = vrot.slane %v611, %v625
  %v627 = vlaneseq
  %v628 = vshrl.u32 %v627, 7
  %v629 = vsub.s32 1, %v628
  %v630 = vrot.slane %v612, %v629
  %v631 = vmul.f32 %v25, %v626
  %v632 = vmul.f32 %v25, %v630
  %v633 = vadd.f32 %v621, %v631
  %v634 = vadd.f32 %v622, %v632
  %v635 = vlaneseq
  %v636 = vshrl.u32 %v635, 7
  %v637 = vsub.s32 2, %v636
  %v638 = vrot.slane %v611, %v637
  %v639 = vlaneseq
  %v640 = vshrl.u32 %v639, 7
  %v641 = vsub.s32 2, %v640
  %v642 = vrot.slane %v612, %v641
  %v643 = vmul.f32 %v29, %v638
  %v644 = vmul.f32 %v29, %v642
  %v645 = vadd.f32 %v633, %v643
  %v646 = vadd.f32 %v634, %v644
  %v647 = vlaneseq
  %v648 = vshrl.u32 %v647, 7
  %v649 = vsub.s32 3, %v648
  %v650 = vrot.slane %v611, %v649
  %v651 = vlaneseq
  %v652 = vshrl.u32 %v651, 7
  %v653 = vsub.s32 3, %v652
  %v654 = vrot.slane %v612, %v653
  %v655 = vmul.f32 %v33, %v650
  %v656 = vmul.f32 %v33, %v654
  %v657 = vadd.f32 %v645, %v655
  %v658 = vadd.f32 %v646, %v656
  %v659 = vlaneseq
  %v660 = vshrl.u32 %v659, 7
  %v661 = vsub.s32 4, %v660
  %v662 = vrot.slane %v611, %v661
  %v663 = vlaneseq
  %v664 = vshrl.u32 %v663, 7
  %v665 = vsub.s32 4, %v664
  %v666 = vrot.slane %v612, %v665
  %v667 = vmul.f32 %v37, %v662
  %v668 = vmul.f32 %v37, %v666
  %v669 = vadd.f32 %v657, %v667
  %v670 = vadd.f32 %v658, %v668
  %v671 = vlaneseq
  %v672 = vshrl.u32 %v671, 7
  %v673 = vsub.s32 5, %v672
  %v674 = vrot.slane %v611, %v673
  %v675 = vlaneseq
  %v676 = vshrl.u32 %v675, 7
  %v677 = vsub.s32 5, %v676
  %v678 = vrot.slane %v612, %v677
  %v679 = vmul.f32 %v41, %v674
  %v680 = vmul.f32 %v41, %v678
  %v681 = vadd.f32 %v669, %v679
  %v682 = vadd.f32 %v670, %v680
  %v683 = vlaneseq
  %v684 = vshrl.u32 %v683, 7
  %v685 = vsub.s32 6, %v684
  %v686 = vrot.slane %v611, %v685
  %v687 = vlaneseq
  %v688 = vshrl.u32 %v687, 7
  %v689 = vsub.s32 6, %v688
  %v690 = vrot.slane %v612, %v689
  %v691 = vmul.f32 %v45, %v686
  %v692 = vmul.f32 %v45, %v690
  %v693 = vadd.f32 %v681, %v691
  %v694 = vadd.f32 %v682, %v692
  %v695 = vlaneseq
  %v696 = vshrl.u32 %v695, 7
  %v697 = vsub.s32 7, %v696
  %v698 = vrot.slane %v611, %v697
  %v699 = vlaneseq
  %v700 = vshrl.u32 %v699, 7
  %v701 = vsub.s32 7, %v700
  %v702 = vrot.slane %v612, %v701
  %v703 = vmul.f32 %v49, %v698
  %v704 = vmul.f32 %v49, %v702
  %v705 = vadd.f32 %v693, %v703
  %v706 = vadd.f32 %v694, %v704
  %v707 = vadd.f32 %v51, 0.4
  %709 = vset.pattern.permute.xlu0 0
  %710 = vperm.xlu0 %709, %v707
  %v711 = vpop.permute.xlu0 %710
  %v713 = vadd.f32 %v705, %v711
  %v714 = vadd.f32 %v706, %v711
  %v715 = vtanh.pop %v713
  %v716 = vtanh.pop %v714
  %v717 = vtanh.pop %v611
  %v718 = vtanh.pop %v612
  %v719 = vmul.f32 %v717, 0.2
  %v720 = vmul.f32 %v718, 0.2
  %v721 = vmul.f32 %v717, 0.04
  %v722 = vmul.f32 %v718, 0.04
  %v723 = vmul.f32 %v717, %v717
  %v724 = vmul.f32 %v718, %v718
  %v725 = vsub.f32 1.0, %v723
  %v726 = vsub.f32 1.0, %v724
  %v727 = vmul.f32 %v721, %v725
  %v728 = vmul.f32 %v722, %v726
  %s729 = scalar_lea.vmem %s3, 32
  %v730 = vld [vmem:[%s729] sm:$0xff]
  %v731 = vunpack.c.l.bf16 %v730
  %v732 = vunpack.c.h.bf16 %v730
  %v733 = vmul.f32 %v731, 0.31622776
  %v734 = vmul.f32 %v732, 0.31622776
  %v735 = vmul.f32 %v715, 0.1
  %v736 = vmul.f32 %v716, 0.1
  %v737 = vadd.f32 %v611, %v735
  %v738 = vadd.f32 %v612, %v736
  %v739 = vmul.f32 %v719, %v733
  %v740 = vmul.f32 %v720, %v734
  %v741 = vadd.f32 %v737, %v739
  %v742 = vadd.f32 %v738, %v740
  %v743 = vmul.f32 %v727, 0.5
  %v744 = vmul.f32 %v728, 0.5
  %v745 = vmul.f32 %v733, %v733
  %v746 = vmul.f32 %v734, %v734
  %v747 = vsub.f32 %v745, 0.1
  %v748 = vsub.f32 %v746, 0.1
  %v749 = vmul.f32 %v743, %v747
  %v750 = vmul.f32 %v744, %v748
  %v751 = vadd.f32 %v741, %v749
  %v752 = vadd.f32 %v742, %v750
  %v753 = vlaneseq
  %v754 = vshrl.u32 %v753, 7
  %v755 = vsub.s32 0, %v754
  %v756 = vrot.slane %v751, %v755
  %v757 = vlaneseq
  %v758 = vshrl.u32 %v757, 7
  %v759 = vsub.s32 0, %v758
  %v760 = vrot.slane %v752, %v759
  %v761 = vmul.f32 %v21, %v756
  %v762 = vmul.f32 %v21, %v760
  %v763 = vlaneseq
  %v764 = vshrl.u32 %v763, 7
  %v765 = vsub.s32 1, %v764
  %v766 = vrot.slane %v751, %v765
  %v767 = vlaneseq
  %v768 = vshrl.u32 %v767, 7
  %v769 = vsub.s32 1, %v768
  %v770 = vrot.slane %v752, %v769
  %v771 = vmul.f32 %v25, %v766
  %v772 = vmul.f32 %v25, %v770
  %v773 = vadd.f32 %v761, %v771
  %v774 = vadd.f32 %v762, %v772
  %v775 = vlaneseq
  %v776 = vshrl.u32 %v775, 7
  %v777 = vsub.s32 2, %v776
  %v778 = vrot.slane %v751, %v777
  %v779 = vlaneseq
  %v780 = vshrl.u32 %v779, 7
  %v781 = vsub.s32 2, %v780
  %v782 = vrot.slane %v752, %v781
  %v783 = vmul.f32 %v29, %v778
  %v784 = vmul.f32 %v29, %v782
  %v785 = vadd.f32 %v773, %v783
  %v786 = vadd.f32 %v774, %v784
  %v787 = vlaneseq
  %v788 = vshrl.u32 %v787, 7
  %v789 = vsub.s32 3, %v788
  %v790 = vrot.slane %v751, %v789
  %v791 = vlaneseq
  %v792 = vshrl.u32 %v791, 7
  %v793 = vsub.s32 3, %v792
  %v794 = vrot.slane %v752, %v793
  %v795 = vmul.f32 %v33, %v790
  %v796 = vmul.f32 %v33, %v794
  %v797 = vadd.f32 %v785, %v795
  %v798 = vadd.f32 %v786, %v796
  %v799 = vlaneseq
  %v800 = vshrl.u32 %v799, 7
  %v801 = vsub.s32 4, %v800
  %v802 = vrot.slane %v751, %v801
  %v803 = vlaneseq
  %v804 = vshrl.u32 %v803, 7
  %v805 = vsub.s32 4, %v804
  %v806 = vrot.slane %v752, %v805
  %v807 = vmul.f32 %v37, %v802
  %v808 = vmul.f32 %v37, %v806
  %v809 = vadd.f32 %v797, %v807
  %v810 = vadd.f32 %v798, %v808
  %v811 = vlaneseq
  %v812 = vshrl.u32 %v811, 7
  %v813 = vsub.s32 5, %v812
  %v814 = vrot.slane %v751, %v813
  %v815 = vlaneseq
  %v816 = vshrl.u32 %v815, 7
  %v817 = vsub.s32 5, %v816
  %v818 = vrot.slane %v752, %v817
  %v819 = vmul.f32 %v41, %v814
  %v820 = vmul.f32 %v41, %v818
  %v821 = vadd.f32 %v809, %v819
  %v822 = vadd.f32 %v810, %v820
  %v823 = vlaneseq
  %v824 = vshrl.u32 %v823, 7
  %v825 = vsub.s32 6, %v824
  %v826 = vrot.slane %v751, %v825
  %v827 = vlaneseq
  %v828 = vshrl.u32 %v827, 7
  %v829 = vsub.s32 6, %v828
  %v830 = vrot.slane %v752, %v829
  %v831 = vmul.f32 %v45, %v826
  %v832 = vmul.f32 %v45, %v830
  %v833 = vadd.f32 %v821, %v831
  %v834 = vadd.f32 %v822, %v832
  %v835 = vlaneseq
  %v836 = vshrl.u32 %v835, 7
  %v837 = vsub.s32 7, %v836
  %v838 = vrot.slane %v751, %v837
  %v839 = vlaneseq
  %v840 = vshrl.u32 %v839, 7
  %v841 = vsub.s32 7, %v840
  %v842 = vrot.slane %v752, %v841
  %v843 = vmul.f32 %v49, %v838
  %v844 = vmul.f32 %v49, %v842
  %v845 = vadd.f32 %v833, %v843
  %v846 = vadd.f32 %v834, %v844
  %v847 = vadd.f32 %v51, 0.5
  %849 = vset.pattern.permute.xlu0 0
  %850 = vperm.xlu0 %849, %v847
  %v851 = vpop.permute.xlu0 %850
  %v853 = vadd.f32 %v845, %v851
  %v854 = vadd.f32 %v846, %v851
  %v855 = vtanh.pop %v853
  %v856 = vtanh.pop %v854
  %v857 = vtanh.pop %v751
  %v858 = vtanh.pop %v752
  %v859 = vmul.f32 %v857, 0.2
  %v860 = vmul.f32 %v858, 0.2
  %v861 = vmul.f32 %v857, 0.04
  %v862 = vmul.f32 %v858, 0.04
  %v863 = vmul.f32 %v857, %v857
  %v864 = vmul.f32 %v858, %v858
  %v865 = vsub.f32 1.0, %v863
  %v866 = vsub.f32 1.0, %v864
  %v867 = vmul.f32 %v861, %v865
  %v868 = vmul.f32 %v862, %v866
  %s869 = scalar_lea.vmem %s3, 40
  %v870 = vld [vmem:[%s869] sm:$0xff]
  %v871 = vunpack.c.l.bf16 %v870
  %v872 = vunpack.c.h.bf16 %v870
  %v873 = vmul.f32 %v871, 0.31622776
  %v874 = vmul.f32 %v872, 0.31622776
  %v875 = vmul.f32 %v855, 0.1
  %v876 = vmul.f32 %v856, 0.1
  %v877 = vadd.f32 %v751, %v875
  %v878 = vadd.f32 %v752, %v876
  %v879 = vmul.f32 %v859, %v873
  %v880 = vmul.f32 %v860, %v874
  %v881 = vadd.f32 %v877, %v879
  %v882 = vadd.f32 %v878, %v880
  %v883 = vmul.f32 %v867, 0.5
  %v884 = vmul.f32 %v868, 0.5
  %v885 = vmul.f32 %v873, %v873
  %v886 = vmul.f32 %v874, %v874
  %v887 = vsub.f32 %v885, 0.1
  %v888 = vsub.f32 %v886, 0.1
  %v889 = vmul.f32 %v883, %v887
  %v890 = vmul.f32 %v884, %v888
  %v891 = vadd.f32 %v881, %v889
  %v892 = vadd.f32 %v882, %v890
  %v893 = vlaneseq
  %v894 = vshrl.u32 %v893, 7
  %v895 = vsub.s32 0, %v894
  %v896 = vrot.slane %v891, %v895
  %v897 = vlaneseq
  %v898 = vshrl.u32 %v897, 7
  %v899 = vsub.s32 0, %v898
  %v900 = vrot.slane %v892, %v899
  %v901 = vmul.f32 %v21, %v896
  %v902 = vmul.f32 %v21, %v900
  %v903 = vlaneseq
  %v904 = vshrl.u32 %v903, 7
  %v905 = vsub.s32 1, %v904
  %v906 = vrot.slane %v891, %v905
  %v907 = vlaneseq
  %v908 = vshrl.u32 %v907, 7
  %v909 = vsub.s32 1, %v908
  %v910 = vrot.slane %v892, %v909
  %v911 = vmul.f32 %v25, %v906
  %v912 = vmul.f32 %v25, %v910
  %v913 = vadd.f32 %v901, %v911
  %v914 = vadd.f32 %v902, %v912
  %v915 = vlaneseq
  %v916 = vshrl.u32 %v915, 7
  %v917 = vsub.s32 2, %v916
  %v918 = vrot.slane %v891, %v917
  %v919 = vlaneseq
  %v920 = vshrl.u32 %v919, 7
  %v921 = vsub.s32 2, %v920
  %v922 = vrot.slane %v892, %v921
  %v923 = vmul.f32 %v29, %v918
  %v924 = vmul.f32 %v29, %v922
  %v925 = vadd.f32 %v913, %v923
  %v926 = vadd.f32 %v914, %v924
  %v927 = vlaneseq
  %v928 = vshrl.u32 %v927, 7
  %v929 = vsub.s32 3, %v928
  %v930 = vrot.slane %v891, %v929
  %v931 = vlaneseq
  %v932 = vshrl.u32 %v931, 7
  %v933 = vsub.s32 3, %v932
  %v934 = vrot.slane %v892, %v933
  %v935 = vmul.f32 %v33, %v930
  %v936 = vmul.f32 %v33, %v934
  %v937 = vadd.f32 %v925, %v935
  %v938 = vadd.f32 %v926, %v936
  %v939 = vlaneseq
  %v940 = vshrl.u32 %v939, 7
  %v941 = vsub.s32 4, %v940
  %v942 = vrot.slane %v891, %v941
  %v943 = vlaneseq
  %v944 = vshrl.u32 %v943, 7
  %v945 = vsub.s32 4, %v944
  %v946 = vrot.slane %v892, %v945
  %v947 = vmul.f32 %v37, %v942
  %v948 = vmul.f32 %v37, %v946
  %v949 = vadd.f32 %v937, %v947
  %v950 = vadd.f32 %v938, %v948
  %v951 = vlaneseq
  %v952 = vshrl.u32 %v951, 7
  %v953 = vsub.s32 5, %v952
  %v954 = vrot.slane %v891, %v953
  %v955 = vlaneseq
  %v956 = vshrl.u32 %v955, 7
  %v957 = vsub.s32 5, %v956
  %v958 = vrot.slane %v892, %v957
  %v959 = vmul.f32 %v41, %v954
  %v960 = vmul.f32 %v41, %v958
  %v961 = vadd.f32 %v949, %v959
  %v962 = vadd.f32 %v950, %v960
  %v963 = vlaneseq
  %v964 = vshrl.u32 %v963, 7
  %v965 = vsub.s32 6, %v964
  %v966 = vrot.slane %v891, %v965
  %v967 = vlaneseq
  %v968 = vshrl.u32 %v967, 7
  %v969 = vsub.s32 6, %v968
  %v970 = vrot.slane %v892, %v969
  %v971 = vmul.f32 %v45, %v966
  %v972 = vmul.f32 %v45, %v970
  %v973 = vadd.f32 %v961, %v971
  %v974 = vadd.f32 %v962, %v972
  %v975 = vlaneseq
  %v976 = vshrl.u32 %v975, 7
  %v977 = vsub.s32 7, %v976
  %v978 = vrot.slane %v891, %v977
  %v979 = vlaneseq
  %v980 = vshrl.u32 %v979, 7
  %v981 = vsub.s32 7, %v980
  %v982 = vrot.slane %v892, %v981
  %v983 = vmul.f32 %v49, %v978
  %v984 = vmul.f32 %v49, %v982
  %v985 = vadd.f32 %v973, %v983
  %v986 = vadd.f32 %v974, %v984
  %v987 = vadd.f32 %v51, 0.6
  %989 = vset.pattern.permute.xlu0 0
  %990 = vperm.xlu0 %989, %v987
  %v991 = vpop.permute.xlu0 %990
  %v993 = vadd.f32 %v985, %v991
  %v994 = vadd.f32 %v986, %v991
  %v995 = vtanh.pop %v993
  %v996 = vtanh.pop %v994
  %v997 = vtanh.pop %v891
  %v998 = vtanh.pop %v892
  %v999 = vmul.f32 %v997, 0.2
  %v1000 = vmul.f32 %v998, 0.2
  %v1001 = vmul.f32 %v997, 0.04
  %v1002 = vmul.f32 %v998, 0.04
  %v1003 = vmul.f32 %v997, %v997
  %v1004 = vmul.f32 %v998, %v998
  %v1005 = vsub.f32 1.0, %v1003
  %v1006 = vsub.f32 1.0, %v1004
  %v1007 = vmul.f32 %v1001, %v1005
  %v1008 = vmul.f32 %v1002, %v1006
  %s1009 = scalar_lea.vmem %s3, 48
  %v1010 = vld [vmem:[%s1009] sm:$0xff]
  %v1011 = vunpack.c.l.bf16 %v1010
  %v1012 = vunpack.c.h.bf16 %v1010
  %v1013 = vmul.f32 %v1011, 0.31622776
  %v1014 = vmul.f32 %v1012, 0.31622776
  %v1015 = vmul.f32 %v995, 0.1
  %v1016 = vmul.f32 %v996, 0.1
  %v1017 = vadd.f32 %v891, %v1015
  %v1018 = vadd.f32 %v892, %v1016
  %v1019 = vmul.f32 %v999, %v1013
  %v1020 = vmul.f32 %v1000, %v1014
  %v1021 = vadd.f32 %v1017, %v1019
  %v1022 = vadd.f32 %v1018, %v1020
  %v1023 = vmul.f32 %v1007, 0.5
  %v1024 = vmul.f32 %v1008, 0.5
  %v1025 = vmul.f32 %v1013, %v1013
  %v1026 = vmul.f32 %v1014, %v1014
  %v1027 = vsub.f32 %v1025, 0.1
  %v1028 = vsub.f32 %v1026, 0.1
  %v1029 = vmul.f32 %v1023, %v1027
  %v1030 = vmul.f32 %v1024, %v1028
  %v1031 = vadd.f32 %v1021, %v1029
  %v1032 = vadd.f32 %v1022, %v1030
  %v1033 = vlaneseq
  %v1034 = vshrl.u32 %v1033, 7
  %v1035 = vsub.s32 0, %v1034
  %v1036 = vrot.slane %v1031, %v1035
  %v1037 = vlaneseq
  %v1038 = vshrl.u32 %v1037, 7
  %v1039 = vsub.s32 0, %v1038
  %v1040 = vrot.slane %v1032, %v1039
  %v1041 = vmul.f32 %v21, %v1036
  %v1042 = vmul.f32 %v21, %v1040
  %v1043 = vlaneseq
  %v1044 = vshrl.u32 %v1043, 7
  %v1045 = vsub.s32 1, %v1044
  %v1046 = vrot.slane %v1031, %v1045
  %v1047 = vlaneseq
  %v1048 = vshrl.u32 %v1047, 7
  %v1049 = vsub.s32 1, %v1048
  %v1050 = vrot.slane %v1032, %v1049
  %v1051 = vmul.f32 %v25, %v1046
  %v1052 = vmul.f32 %v25, %v1050
  %v1053 = vadd.f32 %v1041, %v1051
  %v1054 = vadd.f32 %v1042, %v1052
  %v1055 = vlaneseq
  %v1056 = vshrl.u32 %v1055, 7
  %v1057 = vsub.s32 2, %v1056
  %v1058 = vrot.slane %v1031, %v1057
  %v1059 = vlaneseq
  %v1060 = vshrl.u32 %v1059, 7
  %v1061 = vsub.s32 2, %v1060
  %v1062 = vrot.slane %v1032, %v1061
  %v1063 = vmul.f32 %v29, %v1058
  %v1064 = vmul.f32 %v29, %v1062
  %v1065 = vadd.f32 %v1053, %v1063
  %v1066 = vadd.f32 %v1054, %v1064
  %v1067 = vlaneseq
  %v1068 = vshrl.u32 %v1067, 7
  %v1069 = vsub.s32 3, %v1068
  %v1070 = vrot.slane %v1031, %v1069
  %v1071 = vlaneseq
  %v1072 = vshrl.u32 %v1071, 7
  %v1073 = vsub.s32 3, %v1072
  %v1074 = vrot.slane %v1032, %v1073
  %v1075 = vmul.f32 %v33, %v1070
  %v1076 = vmul.f32 %v33, %v1074
  %v1077 = vadd.f32 %v1065, %v1075
  %v1078 = vadd.f32 %v1066, %v1076
  %v1079 = vlaneseq
  %v1080 = vshrl.u32 %v1079, 7
  %v1081 = vsub.s32 4, %v1080
  %v1082 = vrot.slane %v1031, %v1081
  %v1083 = vlaneseq
  %v1084 = vshrl.u32 %v1083, 7
  %v1085 = vsub.s32 4, %v1084
  %v1086 = vrot.slane %v1032, %v1085
  %v1087 = vmul.f32 %v37, %v1082
  %v1088 = vmul.f32 %v37, %v1086
  %v1089 = vadd.f32 %v1077, %v1087
  %v1090 = vadd.f32 %v1078, %v1088
  %v1091 = vlaneseq
  %v1092 = vshrl.u32 %v1091, 7
  %v1093 = vsub.s32 5, %v1092
  %v1094 = vrot.slane %v1031, %v1093
  %v1095 = vlaneseq
  %v1096 = vshrl.u32 %v1095, 7
  %v1097 = vsub.s32 5, %v1096
  %v1098 = vrot.slane %v1032, %v1097
  %v1099 = vmul.f32 %v41, %v1094
  %v1100 = vmul.f32 %v41, %v1098
  %v1101 = vadd.f32 %v1089, %v1099
  %v1102 = vadd.f32 %v1090, %v1100
  %v1103 = vlaneseq
  %v1104 = vshrl.u32 %v1103, 7
  %v1105 = vsub.s32 6, %v1104
  %v1106 = vrot.slane %v1031, %v1105
  %v1107 = vlaneseq
  %v1108 = vshrl.u32 %v1107, 7
  %v1109 = vsub.s32 6, %v1108
  %v1110 = vrot.slane %v1032, %v1109
  %v1111 = vmul.f32 %v45, %v1106
  %v1112 = vmul.f32 %v45, %v1110
  %v1113 = vadd.f32 %v1101, %v1111
  %v1114 = vadd.f32 %v1102, %v1112
  %v1115 = vlaneseq
  %v1116 = vshrl.u32 %v1115, 7
  %v1117 = vsub.s32 7, %v1116
  %v1118 = vrot.slane %v1031, %v1117
  %v1119 = vlaneseq
  %v1120 = vshrl.u32 %v1119, 7
  %v1121 = vsub.s32 7, %v1120
  %v1122 = vrot.slane %v1032, %v1121
  %v1123 = vmul.f32 %v49, %v1118
  %v1124 = vmul.f32 %v49, %v1122
  %v1125 = vadd.f32 %v1113, %v1123
  %v1126 = vadd.f32 %v1114, %v1124
  %v1127 = vadd.f32 %v51, 0.7
  %1129 = vset.pattern.permute.xlu0 0
  %1130 = vperm.xlu0 %1129, %v1127
  %v1131 = vpop.permute.xlu0 %1130
  %v1133 = vadd.f32 %v1125, %v1131
  %v1134 = vadd.f32 %v1126, %v1131
  %v1135 = vtanh.pop %v1133
  %v1136 = vtanh.pop %v1134
  %v1137 = vtanh.pop %v1031
  %v1138 = vtanh.pop %v1032
  %v1139 = vmul.f32 %v1137, 0.2
  %v1140 = vmul.f32 %v1138, 0.2
  %v1141 = vmul.f32 %v1137, 0.04
  %v1142 = vmul.f32 %v1138, 0.04
  %v1143 = vmul.f32 %v1137, %v1137
  %v1144 = vmul.f32 %v1138, %v1138
  %v1145 = vsub.f32 1.0, %v1143
  %v1146 = vsub.f32 1.0, %v1144
  %v1147 = vmul.f32 %v1141, %v1145
  %v1148 = vmul.f32 %v1142, %v1146
  %s1149 = scalar_lea.vmem %s3, 56
  %v1150 = vld [vmem:[%s1149] sm:$0xff]
  %v1151 = vunpack.c.l.bf16 %v1150
  %v1152 = vunpack.c.h.bf16 %v1150
  %v1153 = vmul.f32 %v1151, 0.31622776
  %v1154 = vmul.f32 %v1152, 0.31622776
  %v1155 = vmul.f32 %v1135, 0.1
  %v1156 = vmul.f32 %v1136, 0.1
  %v1157 = vadd.f32 %v1031, %v1155
  %v1158 = vadd.f32 %v1032, %v1156
  %v1159 = vmul.f32 %v1139, %v1153
  %v1160 = vmul.f32 %v1140, %v1154
  %v1161 = vadd.f32 %v1157, %v1159
  %v1162 = vadd.f32 %v1158, %v1160
  %v1163 = vmul.f32 %v1147, 0.5
  %v1164 = vmul.f32 %v1148, 0.5
  %v1165 = vmul.f32 %v1153, %v1153
  %v1166 = vmul.f32 %v1154, %v1154
  %v1167 = vsub.f32 %v1165, 0.1
  %v1168 = vsub.f32 %v1166, 0.1
  %v1169 = vmul.f32 %v1163, %v1167
  %v1170 = vmul.f32 %v1164, %v1168
  %v1171 = vadd.f32 %v1161, %v1169
  %v1172 = vadd.f32 %v1162, %v1170
  %v1173 = vlaneseq
  %v1174 = vshrl.u32 %v1173, 7
  %v1175 = vsub.s32 0, %v1174
  %v1176 = vrot.slane %v1171, %v1175
  %v1177 = vlaneseq
  %v1178 = vshrl.u32 %v1177, 7
  %v1179 = vsub.s32 0, %v1178
  %v1180 = vrot.slane %v1172, %v1179
  %v1181 = vmul.f32 %v21, %v1176
  %v1182 = vmul.f32 %v21, %v1180
  %v1183 = vlaneseq
  %v1184 = vshrl.u32 %v1183, 7
  %v1185 = vsub.s32 1, %v1184
  %v1186 = vrot.slane %v1171, %v1185
  %v1187 = vlaneseq
  %v1188 = vshrl.u32 %v1187, 7
  %v1189 = vsub.s32 1, %v1188
  %v1190 = vrot.slane %v1172, %v1189
  %v1191 = vmul.f32 %v25, %v1186
  %v1192 = vmul.f32 %v25, %v1190
  %v1193 = vadd.f32 %v1181, %v1191
  %v1194 = vadd.f32 %v1182, %v1192
  %v1195 = vlaneseq
  %v1196 = vshrl.u32 %v1195, 7
  %v1197 = vsub.s32 2, %v1196
  %v1198 = vrot.slane %v1171, %v1197
  %v1199 = vlaneseq
  %v1200 = vshrl.u32 %v1199, 7
  %v1201 = vsub.s32 2, %v1200
  %v1202 = vrot.slane %v1172, %v1201
  %v1203 = vmul.f32 %v29, %v1198
  %v1204 = vmul.f32 %v29, %v1202
  %v1205 = vadd.f32 %v1193, %v1203
  %v1206 = vadd.f32 %v1194, %v1204
  %v1207 = vlaneseq
  %v1208 = vshrl.u32 %v1207, 7
  %v1209 = vsub.s32 3, %v1208
  %v1210 = vrot.slane %v1171, %v1209
  %v1211 = vlaneseq
  %v1212 = vshrl.u32 %v1211, 7
  %v1213 = vsub.s32 3, %v1212
  %v1214 = vrot.slane %v1172, %v1213
  %v1215 = vmul.f32 %v33, %v1210
  %v1216 = vmul.f32 %v33, %v1214
  %v1217 = vadd.f32 %v1205, %v1215
  %v1218 = vadd.f32 %v1206, %v1216
  %v1219 = vlaneseq
  %v1220 = vshrl.u32 %v1219, 7
  %v1221 = vsub.s32 4, %v1220
  %v1222 = vrot.slane %v1171, %v1221
  %v1223 = vlaneseq
  %v1224 = vshrl.u32 %v1223, 7
  %v1225 = vsub.s32 4, %v1224
  %v1226 = vrot.slane %v1172, %v1225
  %v1227 = vmul.f32 %v37, %v1222
  %v1228 = vmul.f32 %v37, %v1226
  %v1229 = vadd.f32 %v1217, %v1227
  %v1230 = vadd.f32 %v1218, %v1228
  %v1231 = vlaneseq
  %v1232 = vshrl.u32 %v1231, 7
  %v1233 = vsub.s32 5, %v1232
  %v1234 = vrot.slane %v1171, %v1233
  %v1235 = vlaneseq
  %v1236 = vshrl.u32 %v1235, 7
  %v1237 = vsub.s32 5, %v1236
  %v1238 = vrot.slane %v1172, %v1237
  %v1239 = vmul.f32 %v41, %v1234
  %v1240 = vmul.f32 %v41, %v1238
  %v1241 = vadd.f32 %v1229, %v1239
  %v1242 = vadd.f32 %v1230, %v1240
  %v1243 = vlaneseq
  %v1244 = vshrl.u32 %v1243, 7
  %v1245 = vsub.s32 6, %v1244
  %v1246 = vrot.slane %v1171, %v1245
  %v1247 = vlaneseq
  %v1248 = vshrl.u32 %v1247, 7
  %v1249 = vsub.s32 6, %v1248
  %v1250 = vrot.slane %v1172, %v1249
  %v1251 = vmul.f32 %v45, %v1246
  %v1252 = vmul.f32 %v45, %v1250
  %v1253 = vadd.f32 %v1241, %v1251
  %v1254 = vadd.f32 %v1242, %v1252
  %v1255 = vlaneseq
  %v1256 = vshrl.u32 %v1255, 7
  %v1257 = vsub.s32 7, %v1256
  %v1258 = vrot.slane %v1171, %v1257
  %v1259 = vlaneseq
  %v1260 = vshrl.u32 %v1259, 7
  %v1261 = vsub.s32 7, %v1260
  %v1262 = vrot.slane %v1172, %v1261
  %v1263 = vmul.f32 %v49, %v1258
  %v1264 = vmul.f32 %v49, %v1262
  %v1265 = vadd.f32 %v1253, %v1263
  %v1266 = vadd.f32 %v1254, %v1264
  %v1267 = vadd.f32 %v51, 0.8
  %1269 = vset.pattern.permute.xlu0 0
  %1270 = vperm.xlu0 %1269, %v1267
  %v1271 = vpop.permute.xlu0 %1270
  %v1273 = vadd.f32 %v1265, %v1271
  %v1274 = vadd.f32 %v1266, %v1271
  %v1275 = vtanh.pop %v1273
  %v1276 = vtanh.pop %v1274
  %v1277 = vtanh.pop %v1171
  %v1278 = vtanh.pop %v1172
  %v1279 = vmul.f32 %v1277, 0.2
  %v1280 = vmul.f32 %v1278, 0.2
  %v1281 = vmul.f32 %v1277, 0.04
  %v1282 = vmul.f32 %v1278, 0.04
  %v1283 = vmul.f32 %v1277, %v1277
  %v1284 = vmul.f32 %v1278, %v1278
  %v1285 = vsub.f32 1.0, %v1283
  %v1286 = vsub.f32 1.0, %v1284
  %v1287 = vmul.f32 %v1281, %v1285
  %v1288 = vmul.f32 %v1282, %v1286
  %s1289 = scalar_lea.vmem %s3, 64
  %v1290 = vld [vmem:[%s1289] sm:$0xff]
  %v1291 = vunpack.c.l.bf16 %v1290
  %v1292 = vunpack.c.h.bf16 %v1290
  %v1293 = vmul.f32 %v1291, 0.31622776
  %v1294 = vmul.f32 %v1292, 0.31622776
  %v1295 = vmul.f32 %v1275, 0.1
  %v1296 = vmul.f32 %v1276, 0.1
  %v1297 = vadd.f32 %v1171, %v1295
  %v1298 = vadd.f32 %v1172, %v1296
  %v1299 = vmul.f32 %v1279, %v1293
  %v1300 = vmul.f32 %v1280, %v1294
  %v1301 = vadd.f32 %v1297, %v1299
  %v1302 = vadd.f32 %v1298, %v1300
  %v1303 = vmul.f32 %v1287, 0.5
  %v1304 = vmul.f32 %v1288, 0.5
  %v1305 = vmul.f32 %v1293, %v1293
  %v1306 = vmul.f32 %v1294, %v1294
  %v1307 = vsub.f32 %v1305, 0.1
  %v1308 = vsub.f32 %v1306, 0.1
  %v1309 = vmul.f32 %v1303, %v1307
  %v1310 = vmul.f32 %v1304, %v1308
  %v1311 = vadd.f32 %v1301, %v1309
  %v1312 = vadd.f32 %v1302, %v1310
  %v1313 = vlaneseq
  %v1314 = vshrl.u32 %v1313, 7
  %v1315 = vsub.s32 0, %v1314
  %v1316 = vrot.slane %v1311, %v1315
  %v1317 = vlaneseq
  %v1318 = vshrl.u32 %v1317, 7
  %v1319 = vsub.s32 0, %v1318
  %v1320 = vrot.slane %v1312, %v1319
  %v1321 = vmul.f32 %v21, %v1316
  %v1322 = vmul.f32 %v21, %v1320
  %v1323 = vlaneseq
  %v1324 = vshrl.u32 %v1323, 7
  %v1325 = vsub.s32 1, %v1324
  %v1326 = vrot.slane %v1311, %v1325
  %v1327 = vlaneseq
  %v1328 = vshrl.u32 %v1327, 7
  %v1329 = vsub.s32 1, %v1328
  %v1330 = vrot.slane %v1312, %v1329
  %v1331 = vmul.f32 %v25, %v1326
  %v1332 = vmul.f32 %v25, %v1330
  %v1333 = vadd.f32 %v1321, %v1331
  %v1334 = vadd.f32 %v1322, %v1332
  %v1335 = vlaneseq
  %v1336 = vshrl.u32 %v1335, 7
  %v1337 = vsub.s32 2, %v1336
  %v1338 = vrot.slane %v1311, %v1337
  %v1339 = vlaneseq
  %v1340 = vshrl.u32 %v1339, 7
  %v1341 = vsub.s32 2, %v1340
  %v1342 = vrot.slane %v1312, %v1341
  %v1343 = vmul.f32 %v29, %v1338
  %v1344 = vmul.f32 %v29, %v1342
  %v1345 = vadd.f32 %v1333, %v1343
  %v1346 = vadd.f32 %v1334, %v1344
  %v1347 = vlaneseq
  %v1348 = vshrl.u32 %v1347, 7
  %v1349 = vsub.s32 3, %v1348
  %v1350 = vrot.slane %v1311, %v1349
  %v1351 = vlaneseq
  %v1352 = vshrl.u32 %v1351, 7
  %v1353 = vsub.s32 3, %v1352
  %v1354 = vrot.slane %v1312, %v1353
  %v1355 = vmul.f32 %v33, %v1350
  %v1356 = vmul.f32 %v33, %v1354
  %v1357 = vadd.f32 %v1345, %v1355
  %v1358 = vadd.f32 %v1346, %v1356
  %v1359 = vlaneseq
  %v1360 = vshrl.u32 %v1359, 7
  %v1361 = vsub.s32 4, %v1360
  %v1362 = vrot.slane %v1311, %v1361
  %v1363 = vlaneseq
  %v1364 = vshrl.u32 %v1363, 7
  %v1365 = vsub.s32 4, %v1364
  %v1366 = vrot.slane %v1312, %v1365
  %v1367 = vmul.f32 %v37, %v1362
  %v1368 = vmul.f32 %v37, %v1366
  %v1369 = vadd.f32 %v1357, %v1367
  %v1370 = vadd.f32 %v1358, %v1368
  %v1371 = vlaneseq
  %v1372 = vshrl.u32 %v1371, 7
  %v1373 = vsub.s32 5, %v1372
  %v1374 = vrot.slane %v1311, %v1373
  %v1375 = vlaneseq
  %v1376 = vshrl.u32 %v1375, 7
  %v1377 = vsub.s32 5, %v1376
  %v1378 = vrot.slane %v1312, %v1377
  %v1379 = vmul.f32 %v41, %v1374
  %v1380 = vmul.f32 %v41, %v1378
  %v1381 = vadd.f32 %v1369, %v1379
  %v1382 = vadd.f32 %v1370, %v1380
  %v1383 = vlaneseq
  %v1384 = vshrl.u32 %v1383, 7
  %v1385 = vsub.s32 6, %v1384
  %v1386 = vrot.slane %v1311, %v1385
  %v1387 = vlaneseq
  %v1388 = vshrl.u32 %v1387, 7
  %v1389 = vsub.s32 6, %v1388
  %v1390 = vrot.slane %v1312, %v1389
  %v1391 = vmul.f32 %v45, %v1386
  %v1392 = vmul.f32 %v45, %v1390
  %v1393 = vadd.f32 %v1381, %v1391
  %v1394 = vadd.f32 %v1382, %v1392
  %v1395 = vlaneseq
  %v1396 = vshrl.u32 %v1395, 7
  %v1397 = vsub.s32 7, %v1396
  %v1398 = vrot.slane %v1311, %v1397
  %v1399 = vlaneseq
  %v1400 = vshrl.u32 %v1399, 7
  %v1401 = vsub.s32 7, %v1400
  %v1402 = vrot.slane %v1312, %v1401
  %v1403 = vmul.f32 %v49, %v1398
  %v1404 = vmul.f32 %v49, %v1402
  %v1405 = vadd.f32 %v1393, %v1403
  %v1406 = vadd.f32 %v1394, %v1404
  %v1407 = vadd.f32 %v51, 0.90000004
  %1409 = vset.pattern.permute.xlu0 0
  %1410 = vperm.xlu0 %1409, %v1407
  %v1411 = vpop.permute.xlu0 %1410
  %v1413 = vadd.f32 %v1405, %v1411
  %v1414 = vadd.f32 %v1406, %v1411
  %v1415 = vtanh.pop %v1413
  %v1416 = vtanh.pop %v1414
  %v1417 = vtanh.pop %v1311
  %v1418 = vtanh.pop %v1312
  %v1419 = vmul.f32 %v1417, 0.2
  %v1420 = vmul.f32 %v1418, 0.2
  %v1421 = vmul.f32 %v1417, 0.04
  %v1422 = vmul.f32 %v1418, 0.04
  %v1423 = vmul.f32 %v1417, %v1417
  %v1424 = vmul.f32 %v1418, %v1418
  %v1425 = vsub.f32 1.0, %v1423
  %v1426 = vsub.f32 1.0, %v1424
  %v1427 = vmul.f32 %v1421, %v1425
  %v1428 = vmul.f32 %v1422, %v1426
  %s1429 = scalar_lea.vmem %s3, 72
  %v1430 = vld [vmem:[%s1429] sm:$0xff]
  %v1431 = vunpack.c.l.bf16 %v1430
  %v1432 = vunpack.c.h.bf16 %v1430
  %v1433 = vmul.f32 %v1431, 0.31622776
  %v1434 = vmul.f32 %v1432, 0.31622776
  %v1435 = vmul.f32 %v1415, 0.1
  %v1436 = vmul.f32 %v1416, 0.1
  %v1437 = vadd.f32 %v1311, %v1435
  %v1438 = vadd.f32 %v1312, %v1436
  %v1439 = vmul.f32 %v1419, %v1433
  %v1440 = vmul.f32 %v1420, %v1434
  %v1441 = vadd.f32 %v1437, %v1439
  %v1442 = vadd.f32 %v1438, %v1440
  %v1443 = vmul.f32 %v1427, 0.5
  %v1444 = vmul.f32 %v1428, 0.5
  %v1445 = vmul.f32 %v1433, %v1433
  %v1446 = vmul.f32 %v1434, %v1434
  %v1447 = vsub.f32 %v1445, 0.1
  %v1448 = vsub.f32 %v1446, 0.1
  %v1449 = vmul.f32 %v1443, %v1447
  %v1450 = vmul.f32 %v1444, %v1448
  %v1451 = vadd.f32 %v1441, %v1449
  %v1452 = vadd.f32 %v1442, %v1450
  %1453 = vst [vmem:[%s4] sm:$0xff] %v1451
  %1454 = vst [vmem:[%s4 + $0x8] sm:$0xff] %v1452
  // Predicated region
  $region18: #{sde_block_forward.1} parent=0 // pred_check
    _
  $region19: #{sde_block_forward.1} parent=0 // pred_check_branch
    %1456 = sbr.rel (0) target = $region21
  $region20: #{sde_block_forward.1} parent=0 // pred_region
    _
  $region21: #{sde_block_forward.1} parent=0 // pred_fallthru
    _
  // Predicated region
  $region22: #{sde_block_forward.1} parent=0 // pred_check
    _
  $region23: #{sde_block_forward.1} parent=0 // pred_check_branch
    %1458 = sbr.rel (0) target = $region25
  $region24: #{sde_block_forward.1} parent=0 // pred_region
    _
  $region25: #{sde_block_forward.1} parent=0 // pred_fallthru
    _

</llo_original>
